<compile_context>
chip_gen: v6e
topology: v6e:2x2x1
jax: 0.10.0
libtpu: 0.0.40
codegen_flags: <defaults>
</compile_context>

<pallas_src>
import jax
import jax.numpy as jnp
import numpy as np
from jax.experimental import pallas as pl
from jax.experimental.pallas import tpu as pltpu


def _down_kernel(x_ref, w1_ref, a1_ref, w2_ref, a2_ref, o_ref):
    # x_ref : (nb, 4, Ho, Wo, Cin)  -- 4 taps of each 2x2 pool window stacked
    #                                  on axis 1 (layout prep in the wrapper).
    # w1_ref: (9*Cin,  Cmid)        -- conv1 weights, im2col/matmul-ready.
    # a1_ref: (1,) SMEM             -- PReLU #1 slope.
    # w2_ref: (9*Cmid, Cout)        -- conv2 weights, im2col/matmul-ready.
    # a2_ref: (1,) SMEM             -- PReLU #2 slope.
    # o_ref : (nb, Ho, Wo, Cout)
    nb, _, Ho, Wo, Cin = x_ref.shape
    Cmid = w1_ref.shape[-1]
    Cout = w2_ref.shape[-1]
    hw = Ho * Wo
    inv_hw = 1.0 / hw
    eps = 1e-5

    # ---- MaxPool2d(2): elementwise max over the 4 stacked window taps ----
    x = x_ref[...]                       # native dtype, no f32 cast
    pooled = jnp.maximum(jnp.maximum(x[:, 0], x[:, 1]),
                         jnp.maximum(x[:, 2], x[:, 3]))   # (nb, Ho, Wo, Cin)

    def conv3x3_im2col(inp, w_ref, c_in):
        # inp: (nb, Ho, Wo, c_in); w_ref: (9*c_in, c_out).
        # Zero 'SAME' padding + im2col -> one MXU matmul (K = 9*c_in).
        p = jnp.pad(inp, ((0, 0), (1, 1), (1, 1), (0, 0)))
        taps = [p[:, dy:dy + Ho, dx:dx + Wo, :]
                for dy in range(3) for dx in range(3)]
        patches = jnp.concatenate(taps, axis=-1)           # (nb,Ho,Wo,9*c_in)
        patches = patches.reshape(nb * hw, 9 * c_in)
        return jnp.dot(patches, w_ref[...],
                       preferred_element_type=jnp.float32)  # (nb*hw, c_out) f32

    def inorm_prelu(acc, a, c):
        # acc: (nb*hw, c) f32. InstanceNorm2d (biased var, eps=1e-5) + PReLU,
        # statistics fused into a single pass (sum + sum of squares).
        v = acc.reshape(nb, hw, c)
        s = jnp.sum(v, axis=1, keepdims=True)
        sq = jnp.sum(v * v, axis=1, keepdims=True)
        mean = s * inv_hw
        var = jnp.maximum(sq * inv_hw - mean * mean, 0.0)
        y = (v - mean) * jax.lax.rsqrt(var + eps)
        return jnp.where(y >= 0, y, a * y)                 # (nb, hw, c) f32

    # ---- Conv1 -> InstanceNorm -> PReLU ----
    acc1 = conv3x3_im2col(pooled, w1_ref, Cin)
    y = inorm_prelu(acc1, a1_ref[0], Cmid).reshape(nb, Ho, Wo, Cmid)

    # ---- Conv2 -> InstanceNorm -> PReLU ----
    acc2 = conv3x3_im2col(y, w2_ref, Cmid)
    z = inorm_prelu(acc2, a2_ref[0], Cout)                 # (nb, hw, Cout)

    # Tile-aligned split of the flat pixel axis back into (Ho, Wo); the final
    # (Wo, Cout) -> Wo*Cout lane fold is left to the wrapper (pure layout) to
    # avoid an in-kernel cross-lane relayout at these tiny channel counts.
    o_ref[...] = z.reshape(nb, Ho, Wo, Cout).astype(o_ref.dtype)


def down_forward(x_nchw, w1_oihw, a1, w2_oihw, a2, *, block_n=None):
    """Forward of Down(in_c, out_c, bn=True). x_nchw: (N, Cin, H, W)."""
    N, Cin, H, W = x_nchw.shape
    assert H % 2 == 0 and W % 2 == 0, "MaxPool2d(2) expects even spatial dims"
    Ho, Wo = H // 2, W // 2
    Cmid = w1_oihw.shape[0]
    Cout = w2_oihw.shape[0]
    assert w1_oihw.shape == (Cmid, Cin, 3, 3)
    assert w2_oihw.shape == (Cout, Cmid, 3, 3)

    if block_n is None:
        block_n = N          # small batches: whole batch in one grid step
    assert N % block_n == 0

    # NCHW -> NHWC, then stack each 2x2 pool window's 4 taps on a leading axis
    # so the kernel's max-pool is a max over slices of an outer dim.
    x = jnp.transpose(x_nchw, (0, 2, 3, 1))                      # (N,H,W,Cin)
    x = x.reshape(N, Ho, 2, Wo, 2, Cin)
    x = jnp.transpose(x, (0, 2, 4, 1, 3, 5)).reshape(N, 4, Ho, Wo, Cin)

    # PyTorch OIHW -> im2col matmul layout: rows ordered (dy, dx, cin).
    w1 = jnp.transpose(w1_oihw, (2, 3, 1, 0)).reshape(9 * Cin, Cmid)
    w2 = jnp.transpose(w2_oihw, (2, 3, 1, 0)).reshape(9 * Cmid, Cout)

    out = pl.pallas_call(
        _down_kernel,
        out_shape=jax.ShapeDtypeStruct((N, Ho, Wo, Cout), x_nchw.dtype),
        grid=(N // block_n,),
        in_specs=[
            pl.BlockSpec((block_n, 4, Ho, Wo, Cin), lambda n: (n, 0, 0, 0, 0)),
            pl.BlockSpec((9 * Cin, Cmid), lambda n: (0, 0)),
            pl.BlockSpec(memory_space=pltpu.MemorySpace.SMEM),
            pl.BlockSpec((9 * Cmid, Cout), lambda n: (0, 0)),
            pl.BlockSpec(memory_space=pltpu.MemorySpace.SMEM),
        ],
        out_specs=pl.BlockSpec((block_n, Ho, Wo, Cout), lambda n: (n, 0, 0, 0)),
        compiler_params=pltpu.CompilerParams(
            dimension_semantics=("parallel",)),
    )(x, w1, a1, w2, a2)

    # NHWC -> NCHW
    return jnp.transpose(out, (0, 3, 1, 2))


def _reference(x, w1, a1, w2, a2):
    """Pure-JAX reference mirroring the PyTorch Down module."""
    N, C, H, W = x.shape
    xp = x.reshape(N, C, H // 2, 2, W // 2, 2).max(axis=(3, 5))  # MaxPool2d(2)

    def conv(x, w):
        return jax.lax.conv_general_dilated(
            x, w, (1, 1), 'SAME', dimension_numbers=('NCHW', 'OIHW', 'NCHW'))

    def inorm(x):
        m = x.mean(axis=(2, 3), keepdims=True)
        v = ((x - m) ** 2).mean(axis=(2, 3), keepdims=True)
        return (x - m) * jax.lax.rsqrt(v + 1e-5)

    def prelu(x, a):
        return jnp.where(x >= 0, x, a * x)

    h = prelu(inorm(conv(xp, w1)), a1[0])
    return prelu(inorm(conv(h, w2)), a2[0])


if __name__ == "__main__":
    # Small shapes consistent with the module: batch=2, in=4, out=8, 16x16.
    N, Cin, H, W = 2, 4, 16, 16
    Cout = 8
    Cmid = Cout  # mid_channels defaults to out_channels

    key = jax.random.PRNGKey(0)
    kx, kw1, kw2 = jax.random.split(key, 3)

    x = jax.random.normal(kx, (N, Cin, H, W), dtype=jnp.float32)
    # PyTorch-shaped parameters: (out, in, 3, 3), conv bias=False.
    w1 = jax.random.normal(kw1, (Cmid, Cin, 3, 3), dtype=jnp.float32) * 0.1
    w2 = jax.random.normal(kw2, (Cout, Cmid, 3, 3), dtype=jnp.float32) * 0.1
    a1 = jnp.full((1,), 0.25, dtype=jnp.float32)  # nn.PReLU() default slope
    a2 = jnp.full((1,), 0.25, dtype=jnp.float32)

    out = jax.block_until_ready(down_forward(x, w1, a1, w2, a2))
    ref = jax.block_until_ready(_reference(x, w1, a1, w2, a2))

    np.testing.assert_allclose(np.asarray(out), np.asarray(ref),
                               rtol=2e-3, atol=2e-3)
    print("KERNEL_OK")
</pallas_src>

<mosaic_0001>
module attributes {stable_mosaic.version = 11 : i64} {
  func.func @_down_kernel(%arg0: i32, %arg1: memref<2x4x8x8x4xf32, #tpu.memory_space<vmem>>, %arg2: memref<36x8xf32, #tpu.memory_space<vmem>>, %arg3: memref<1xf32, #tpu.memory_space<smem>>, %arg4: memref<72x8xf32, #tpu.memory_space<vmem>>, %arg5: memref<1xf32, #tpu.memory_space<smem>>, %arg6: memref<2x8x8x8xf32, #tpu.memory_space<vmem>>) attributes {dimension_semantics = [#tpu.dimension_semantics<parallel>], iteration_bounds = array<i64: 1>, scalar_prefetch = 0 : i64, scratch_operands = 0 : i64, tpu.core_type = #tpu.core_type<tc>, window_params = [{transform_indices = @transform_0, window_bounds = array<i64: 2, 4, 8, 8, 4>}, {pipeline_mode = #tpu.pipeline_mode<synchronous>, transform_indices = @transform_1, window_bounds = array<i64: 36, 8>}, {transform_indices = @transform_2, window_bounds = array<i64: 1>}, {pipeline_mode = #tpu.pipeline_mode<synchronous>, transform_indices = @transform_3, window_bounds = array<i64: 72, 8>}, {transform_indices = @transform_4, window_bounds = array<i64: 1>}, {transform_indices = @transform_5, window_bounds = array<i64: 2, 8, 8, 8>}]} {
    %c0 = arith.constant 0 : index
    %c0_0 = arith.constant 0 : index
    %c0_1 = arith.constant 0 : index
    %c0_2 = arith.constant 0 : index
    %c0_3 = arith.constant 0 : index
    %0 = vector.load %arg1[%c0, %c0_0, %c0_1, %c0_2, %c0_3] : memref<2x4x8x8x4xf32, #tpu.memory_space<vmem>>, vector<2x4x8x8x4xf32>
    %1 = vector.extract_strided_slice %0 {offsets = [0, 0, 0, 0, 0], sizes = [2, 1, 8, 8, 4], strides = [1, 1, 1, 1, 1]} : vector<2x4x8x8x4xf32> to vector<2x1x8x8x4xf32>
    %2 = vector.shape_cast %1 : vector<2x1x8x8x4xf32> to vector<2x8x8x4xf32>
    %3 = vector.extract_strided_slice %0 {offsets = [0, 1, 0, 0, 0], sizes = [2, 1, 8, 8, 4], strides = [1, 1, 1, 1, 1]} : vector<2x4x8x8x4xf32> to vector<2x1x8x8x4xf32>
    %4 = vector.shape_cast %3 : vector<2x1x8x8x4xf32> to vector<2x8x8x4xf32>
    %5 = arith.maximumf %2, %4 : vector<2x8x8x4xf32>
    %6 = vector.extract_strided_slice %0 {offsets = [0, 2, 0, 0, 0], sizes = [2, 1, 8, 8, 4], strides = [1, 1, 1, 1, 1]} : vector<2x4x8x8x4xf32> to vector<2x1x8x8x4xf32>
    %7 = vector.shape_cast %6 : vector<2x1x8x8x4xf32> to vector<2x8x8x4xf32>
    %8 = vector.extract_strided_slice %0 {offsets = [0, 3, 0, 0, 0], sizes = [2, 1, 8, 8, 4], strides = [1, 1, 1, 1, 1]} : vector<2x4x8x8x4xf32> to vector<2x1x8x8x4xf32>
    %9 = vector.shape_cast %8 : vector<2x1x8x8x4xf32> to vector<2x8x8x4xf32>
    %10 = arith.maximumf %7, %9 : vector<2x8x8x4xf32>
    %11 = arith.maximumf %5, %10 : vector<2x8x8x4xf32>
    %c0_i32 = arith.constant 0 : i32
    %12 = arith.sitofp %c0_i32 : i32 to f32
    %13 = vector.broadcast %12 : f32 to vector<2x1x8x4xf32>
    %14 = tpu.concatenate %13, %11 in 1 : vector<2x1x8x4xf32>, vector<2x8x8x4xf32> -> vector<2x9x8x4xf32>
    %15 = vector.broadcast %12 : f32 to vector<2x1x8x4xf32>
    %16 = tpu.concatenate %14, %15 in 1 : vector<2x9x8x4xf32>, vector<2x1x8x4xf32> -> vector<2x10x8x4xf32>
    %17 = vector.broadcast %12 : f32 to vector<2x10x1x4xf32>
    %18 = tpu.concatenate %17, %16 in 2 : vector<2x10x1x4xf32>, vector<2x10x8x4xf32> -> vector<2x10x9x4xf32>
    %19 = vector.broadcast %12 : f32 to vector<2x10x1x4xf32>
    %20 = tpu.concatenate %18, %19 in 2 : vector<2x10x9x4xf32>, vector<2x10x1x4xf32> -> vector<2x10x10x4xf32>
    %21 = vector.extract_strided_slice %20 {offsets = [0, 0, 0, 0], sizes = [2, 8, 8, 4], strides = [1, 1, 1, 1]} : vector<2x10x10x4xf32> to vector<2x8x8x4xf32>
    %22 = vector.extract_strided_slice %20 {offsets = [0, 0, 1, 0], sizes = [2, 8, 8, 4], strides = [1, 1, 1, 1]} : vector<2x10x10x4xf32> to vector<2x8x8x4xf32>
    %23 = vector.extract_strided_slice %20 {offsets = [0, 0, 2, 0], sizes = [2, 8, 8, 4], strides = [1, 1, 1, 1]} : vector<2x10x10x4xf32> to vector<2x8x8x4xf32>
    %24 = vector.extract_strided_slice %20 {offsets = [0, 1, 0, 0], sizes = [2, 8, 8, 4], strides = [1, 1, 1, 1]} : vector<2x10x10x4xf32> to vector<2x8x8x4xf32>
    %25 = vector.extract_strided_slice %20 {offsets = [0, 1, 1, 0], sizes = [2, 8, 8, 4], strides = [1, 1, 1, 1]} : vector<2x10x10x4xf32> to vector<2x8x8x4xf32>
    %26 = vector.extract_strided_slice %20 {offsets = [0, 1, 2, 0], sizes = [2, 8, 8, 4], strides = [1, 1, 1, 1]} : vector<2x10x10x4xf32> to vector<2x8x8x4xf32>
    %27 = vector.extract_strided_slice %20 {offsets = [0, 2, 0, 0], sizes = [2, 8, 8, 4], strides = [1, 1, 1, 1]} : vector<2x10x10x4xf32> to vector<2x8x8x4xf32>
    %28 = vector.extract_strided_slice %20 {offsets = [0, 2, 1, 0], sizes = [2, 8, 8, 4], strides = [1, 1, 1, 1]} : vector<2x10x10x4xf32> to vector<2x8x8x4xf32>
    %29 = vector.extract_strided_slice %20 {offsets = [0, 2, 2, 0], sizes = [2, 8, 8, 4], strides = [1, 1, 1, 1]} : vector<2x10x10x4xf32> to vector<2x8x8x4xf32>
    %30 = tpu.concatenate %21, %22, %23, %24, %25, %26, %27, %28, %29 in 3 : vector<2x8x8x4xf32>, vector<2x8x8x4xf32>, vector<2x8x8x4xf32>, vector<2x8x8x4xf32>, vector<2x8x8x4xf32>, vector<2x8x8x4xf32>, vector<2x8x8x4xf32>, vector<2x8x8x4xf32>, vector<2x8x8x4xf32> -> vector<2x8x8x36xf32>
    %31 = vector.shape_cast %30 : vector<2x8x8x36xf32> to vector<128x36xf32>
    %c0_4 = arith.constant 0 : index
    %c0_5 = arith.constant 0 : index
    %32 = vector.load %arg2[%c0_4, %c0_5] : memref<36x8xf32, #tpu.memory_space<vmem>>, vector<36x8xf32>
    %cst = arith.constant dense<0.000000e+00> : vector<128x8xf32>
    %33 = tpu.matmul %31, %32, %cst {dimension_numbers = #tpu.dot_dimension_numbers<[1], [0], [0], [1], [0, 0, 1, 1], [], []>} : vector<128x36xf32>, vector<36x8xf32>, vector<128x8xf32> -> vector<128x8xf32>
    %c0_6 = arith.constant 0 : index
    %34 = memref.load %arg3[%c0_6] : memref<1xf32, #tpu.memory_space<smem>>
    %35 = vector.shape_cast %33 : vector<128x8xf32> to vector<2x64x8xf32>
    %cst_7 = arith.constant dense<0.000000e+00> : vector<2x8xf32>
    %36 = vector.multi_reduction <add>, %35, %cst_7 [1] : vector<2x64x8xf32> to vector<2x8xf32>
    %37 = vector.shape_cast %36 : vector<2x8xf32> to vector<2x1x8xf32>
    %38 = arith.mulf %35, %35 : vector<2x64x8xf32>
    %cst_8 = arith.constant dense<0.000000e+00> : vector<2x8xf32>
    %39 = vector.multi_reduction <add>, %38, %cst_8 [1] : vector<2x64x8xf32> to vector<2x8xf32>
    %40 = vector.shape_cast %39 : vector<2x8xf32> to vector<2x1x8xf32>
    %cst_9 = arith.constant 1.562500e-02 : f32
    %41 = vector.broadcast %cst_9 : f32 to vector<2x1x8xf32>
    %42 = arith.mulf %37, %41 : vector<2x1x8xf32>
    %cst_10 = arith.constant 1.562500e-02 : f32
    %43 = vector.broadcast %cst_10 : f32 to vector<2x1x8xf32>
    %44 = arith.mulf %40, %43 : vector<2x1x8xf32>
    %45 = arith.mulf %42, %42 : vector<2x1x8xf32>
    %46 = arith.subf %44, %45 : vector<2x1x8xf32>
    %cst_11 = arith.constant 0.000000e+00 : f32
    %47 = vector.broadcast %cst_11 : f32 to vector<2x1x8xf32>
    %48 = arith.maximumf %46, %47 : vector<2x1x8xf32>
    %49 = vector.broadcast %42 : vector<2x1x8xf32> to vector<2x64x8xf32>
    %50 = arith.subf %35, %49 : vector<2x64x8xf32>
    %cst_12 = arith.constant 9.99999974E-6 : f32
    %51 = vector.broadcast %cst_12 : f32 to vector<2x1x8xf32>
    %52 = arith.addf %48, %51 : vector<2x1x8xf32>
    %53 = math.rsqrt %52 : vector<2x1x8xf32>
    %54 = vector.broadcast %53 : vector<2x1x8xf32> to vector<2x64x8xf32>
    %55 = arith.mulf %50, %54 : vector<2x64x8xf32>
    %cst_13 = arith.constant 0.000000e+00 : f32
    %56 = vector.broadcast %cst_13 : f32 to vector<2x64x8xf32>
    %57 = arith.cmpf oge, %55, %56 : vector<2x64x8xf32>
    %58 = vector.broadcast %34 : f32 to vector<2x64x8xf32>
    %59 = arith.mulf %58, %55 : vector<2x64x8xf32>
    %60 = arith.select %57, %55, %59 : vector<2x64x8xi1>, vector<2x64x8xf32>
    %61 = vector.shape_cast %60 : vector<2x64x8xf32> to vector<2x8x8x8xf32>
    %c0_i32_14 = arith.constant 0 : i32
    %62 = arith.sitofp %c0_i32_14 : i32 to f32
    %63 = vector.broadcast %62 : f32 to vector<2x1x8x8xf32>
    %64 = tpu.concatenate %63, %61 in 1 : vector<2x1x8x8xf32>, vector<2x8x8x8xf32> -> vector<2x9x8x8xf32>
    %65 = vector.broadcast %62 : f32 to vector<2x1x8x8xf32>
    %66 = tpu.concatenate %64, %65 in 1 : vector<2x9x8x8xf32>, vector<2x1x8x8xf32> -> vector<2x10x8x8xf32>
    %67 = vector.broadcast %62 : f32 to vector<2x10x1x8xf32>
    %68 = tpu.concatenate %67, %66 in 2 : vector<2x10x1x8xf32>, vector<2x10x8x8xf32> -> vector<2x10x9x8xf32>
    %69 = vector.broadcast %62 : f32 to vector<2x10x1x8xf32>
    %70 = tpu.concatenate %68, %69 in 2 : vector<2x10x9x8xf32>, vector<2x10x1x8xf32> -> vector<2x10x10x8xf32>
    %71 = vector.extract_strided_slice %70 {offsets = [0, 0, 0, 0], sizes = [2, 8, 8, 8], strides = [1, 1, 1, 1]} : vector<2x10x10x8xf32> to vector<2x8x8x8xf32>
    %72 = vector.extract_strided_slice %70 {offsets = [0, 0, 1, 0], sizes = [2, 8, 8, 8], strides = [1, 1, 1, 1]} : vector<2x10x10x8xf32> to vector<2x8x8x8xf32>
    %73 = vector.extract_strided_slice %70 {offsets = [0, 0, 2, 0], sizes = [2, 8, 8, 8], strides = [1, 1, 1, 1]} : vector<2x10x10x8xf32> to vector<2x8x8x8xf32>
    %74 = vector.extract_strided_slice %70 {offsets = [0, 1, 0, 0], sizes = [2, 8, 8, 8], strides = [1, 1, 1, 1]} : vector<2x10x10x8xf32> to vector<2x8x8x8xf32>
    %75 = vector.extract_strided_slice %70 {offsets = [0, 1, 1, 0], sizes = [2, 8, 8, 8], strides = [1, 1, 1, 1]} : vector<2x10x10x8xf32> to vector<2x8x8x8xf32>
    %76 = vector.extract_strided_slice %70 {offsets = [0, 1, 2, 0], sizes = [2, 8, 8, 8], strides = [1, 1, 1, 1]} : vector<2x10x10x8xf32> to vector<2x8x8x8xf32>
    %77 = vector.extract_strided_slice %70 {offsets = [0, 2, 0, 0], sizes = [2, 8, 8, 8], strides = [1, 1, 1, 1]} : vector<2x10x10x8xf32> to vector<2x8x8x8xf32>
    %78 = vector.extract_strided_slice %70 {offsets = [0, 2, 1, 0], sizes = [2, 8, 8, 8], strides = [1, 1, 1, 1]} : vector<2x10x10x8xf32> to vector<2x8x8x8xf32>
    %79 = vector.extract_strided_slice %70 {offsets = [0, 2, 2, 0], sizes = [2, 8, 8, 8], strides = [1, 1, 1, 1]} : vector<2x10x10x8xf32> to vector<2x8x8x8xf32>
    %80 = tpu.concatenate %71, %72, %73, %74, %75, %76, %77, %78, %79 in 3 : vector<2x8x8x8xf32>, vector<2x8x8x8xf32>, vector<2x8x8x8xf32>, vector<2x8x8x8xf32>, vector<2x8x8x8xf32>, vector<2x8x8x8xf32>, vector<2x8x8x8xf32>, vector<2x8x8x8xf32>, vector<2x8x8x8xf32> -> vector<2x8x8x72xf32>
    %81 = vector.shape_cast %80 : vector<2x8x8x72xf32> to vector<128x72xf32>
    %c0_15 = arith.constant 0 : index
    %c0_16 = arith.constant 0 : index
    %82 = vector.load %arg4[%c0_15, %c0_16] : memref<72x8xf32, #tpu.memory_space<vmem>>, vector<72x8xf32>
    %cst_17 = arith.constant dense<0.000000e+00> : vector<128x8xf32>
    %83 = tpu.matmul %81, %82, %cst_17 {dimension_numbers = #tpu.dot_dimension_numbers<[1], [0], [0], [1], [0, 0, 1, 1], [], []>} : vector<128x72xf32>, vector<72x8xf32>, vector<128x8xf32> -> vector<128x8xf32>
    %c0_18 = arith.constant 0 : index
    %84 = memref.load %arg5[%c0_18] : memref<1xf32, #tpu.memory_space<smem>>
    %85 = vector.shape_cast %83 : vector<128x8xf32> to vector<2x64x8xf32>
    %cst_19 = arith.constant dense<0.000000e+00> : vector<2x8xf32>
    %86 = vector.multi_reduction <add>, %85, %cst_19 [1] : vector<2x64x8xf32> to vector<2x8xf32>
    %87 = vector.shape_cast %86 : vector<2x8xf32> to vector<2x1x8xf32>
    %88 = arith.mulf %85, %85 : vector<2x64x8xf32>
    %cst_20 = arith.constant dense<0.000000e+00> : vector<2x8xf32>
    %89 = vector.multi_reduction <add>, %88, %cst_20 [1] : vector<2x64x8xf32> to vector<2x8xf32>
    %90 = vector.shape_cast %89 : vector<2x8xf32> to vector<2x1x8xf32>
    %cst_21 = arith.constant 1.562500e-02 : f32
    %91 = vector.broadcast %cst_21 : f32 to vector<2x1x8xf32>
    %92 = arith.mulf %87, %91 : vector<2x1x8xf32>
    %cst_22 = arith.constant 1.562500e-02 : f32
    %93 = vector.broadcast %cst_22 : f32 to vector<2x1x8xf32>
    %94 = arith.mulf %90, %93 : vector<2x1x8xf32>
    %95 = arith.mulf %92, %92 : vector<2x1x8xf32>
    %96 = arith.subf %94, %95 : vector<2x1x8xf32>
    %cst_23 = arith.constant 0.000000e+00 : f32
    %97 = vector.broadcast %cst_23 : f32 to vector<2x1x8xf32>
    %98 = arith.maximumf %96, %97 : vector<2x1x8xf32>
    %99 = vector.broadcast %92 : vector<2x1x8xf32> to vector<2x64x8xf32>
    %100 = arith.subf %85, %99 : vector<2x64x8xf32>
    %cst_24 = arith.constant 9.99999974E-6 : f32
    %101 = vector.broadcast %cst_24 : f32 to vector<2x1x8xf32>
    %102 = arith.addf %98, %101 : vector<2x1x8xf32>
    %103 = math.rsqrt %102 : vector<2x1x8xf32>
    %104 = vector.broadcast %103 : vector<2x1x8xf32> to vector<2x64x8xf32>
    %105 = arith.mulf %100, %104 : vector<2x64x8xf32>
    %cst_25 = arith.constant 0.000000e+00 : f32
    %106 = vector.broadcast %cst_25 : f32 to vector<2x64x8xf32>
    %107 = arith.cmpf oge, %105, %106 : vector<2x64x8xf32>
    %108 = vector.broadcast %84 : f32 to vector<2x64x8xf32>
    %109 = arith.mulf %108, %105 : vector<2x64x8xf32>
    %110 = arith.select %107, %105, %109 : vector<2x64x8xi1>, vector<2x64x8xf32>
    %111 = vector.shape_cast %110 : vector<2x64x8xf32> to vector<2x8x8x8xf32>
    %c0_26 = arith.constant 0 : index
    %c0_27 = arith.constant 0 : index
    %c0_28 = arith.constant 0 : index
    %c0_29 = arith.constant 0 : index
    %112 = vector.load %arg6[%c0_26, %c0_27, %c0_28, %c0_29] : memref<2x8x8x8xf32, #tpu.memory_space<vmem>>, vector<2x8x8x8xf32>
    tpu.vector_store %arg6[%c0_26, %c0_27, %c0_28, %c0_29], %111 {strides = array<i32>} : memref<2x8x8x8xf32, #tpu.memory_space<vmem>>, vector<2x8x8x8xf32>,
    return
  }
  func.func @transform_0(%arg0: i32) -> (i32, i32, i32, i32, i32) {
    %c0_i32 = arith.constant 0 : i32
    %c0_i32_0 = arith.constant 0 : i32
    %c0_i32_1 = arith.constant 0 : i32
    %c0_i32_2 = arith.constant 0 : i32
    %c0_i32_3 = arith.constant 0 : i32
    return %arg0, %c0_i32, %c0_i32_0, %c0_i32_1, %c0_i32_2 : i32, i32, i32, i32, i32
  }
  func.func @transform_1(%arg0: i32) -> (i32, i32) {
    %c0_i32 = arith.constant 0 : i32
    %c0_i32_0 = arith.constant 0 : i32
    %c0_i32_1 = arith.constant 0 : i32
    return %c0_i32, %c0_i32_0 : i32, i32
  }
  func.func @transform_2(%arg0: i32) -> i32 {
    %c0_i32 = arith.constant 0 : i32
    %c0_i32_0 = arith.constant 0 : i32
    return %c0_i32 : i32
  }
  func.func @transform_3(%arg0: i32) -> (i32, i32) {
    %c0_i32 = arith.constant 0 : i32
    %c0_i32_0 = arith.constant 0 : i32
    %c0_i32_1 = arith.constant 0 : i32
    return %c0_i32, %c0_i32_0 : i32, i32
  }
  func.func @transform_4(%arg0: i32) -> i32 {
    %c0_i32 = arith.constant 0 : i32
    %c0_i32_0 = arith.constant 0 : i32
    return %c0_i32 : i32
  }
  func.func @transform_5(%arg0: i32) -> (i32, i32, i32, i32) {
    %c0_i32 = arith.constant 0 : i32
    %c0_i32_0 = arith.constant 0 : i32
    %c0_i32_1 = arith.constant 0 : i32
    %c0_i32_2 = arith.constant 0 : i32
    return %arg0, %c0_i32, %c0_i32_0, %c0_i32_1 : i32, i32, i32, i32
  }
}

</mosaic_0001>

<llo_original>
// kernel: tpu_custom_call.1
$region0: #{tpu_custom_call.1}
  #allocation0 [shape = 'u32[]', space=smem, size = 0x4, offset = 0x4, fixed_abs, tag = 'smem constant byte address 0x4 - core index']
  #allocation1 [shape = 'u32[144,128]{1,0:T(1,128)}', space=vmem, size = 0x12000, scoped, tag = 'internal scratch']
  #allocation2 [shape = 'f32[1]{0:T(128)S(6)}', space=smem, size = 0x200, scoped, tag = 'scoped memory for tpu_custom_call.1']
  #allocation3 [shape = 'f32[1]{0:T(128)S(6)}', space=smem, size = 0x200, scoped, tag = 'scoped memory for tpu_custom_call.1']
  %s0 = inlined_call_operand.vmem [shape: f32[2,4,8,8,4], index: 0, kind: input, shape index: {}]
  %s1 = inlined_call_operand.vmem [shape: f32[36,8], index: 1, kind: input, shape index: {}]
  %s2 = inlined_call_operand.<no memory space> [shape: f32[1], index: 2, kind: input, shape index: {}]
  %s3 = inlined_call_operand.vmem [shape: f32[72,8], index: 3, kind: input, shape index: {}]
  %s4 = inlined_call_operand.<no memory space> [shape: f32[1], index: 4, kind: input, shape index: {}]
  %s5 = inlined_call_operand.hbm [shape: f32[2,8,8,8], index: 5, kind: output, shape index: {}]
  %s6 = sld [smem:[#allocation0]]
  $region30: #{tpu_custom_call.1} parent=0
    _
  %s8 = ssub.s32 1, %s6
  %s9 = scalar_select 0, %s8, %s6
  %10 = sst [smem:[#allocation2]] %s2
  %11 = sst [smem:[#allocation3]] %s4
  $region1: #{tpu_custom_call.1} parent=0
    #allocation4 [shape = 'u8[65536]{0}', space=vmem, size = 0x10000, scoped, tag = 'output window, operand 0, single buffered']
    #allocation5 [shape = 's32[1]{0}', space=sflag, size = 0x4, scoped, tag = 'scoped memory for tpu_custom_call.1']
    %12 = vsyncpa [#allocation5], 0
    // Predicated region
    $region2: #{tpu_custom_call.1} parent=1 // pred_check
      _
    $region3: #{tpu_custom_call.1} parent=1 // pred_check_branch
      %14 = sbr.rel (0) target = $region5
    $region4: #{tpu_custom_call.1} parent=1 // pred_region
      _
    $region5: #{tpu_custom_call.1} parent=1 // pred_fallthru
      _
    // Predicated region
    $region6: #{tpu_custom_call.1} parent=1 // pred_check
      _
    $region7: #{tpu_custom_call.1} parent=1 // pred_check_branch
      %16 = sbr.rel (0) target = $region9
    $region8: #{tpu_custom_call.1} parent=1 // pred_region
      _
    $region9: #{tpu_custom_call.1} parent=1 // pred_fallthru
      _
    // Predicated region
    $region10: #{tpu_custom_call.1} parent=1 // pred_check
      _
    $region11: #{tpu_custom_call.1} parent=1 // pred_check_branch
      %18 = sbr.rel (0) target = $region13
    $region12: #{tpu_custom_call.1} parent=1 // pred_region
      _
    $region13: #{tpu_custom_call.1} parent=1 // pred_fallthru
      _
    // Predicated region
    $region14: #{tpu_custom_call.1} parent=1 // pred_check
      _
    $region15: #{tpu_custom_call.1} parent=1 // pred_check_branch
      %20 = sbr.rel (0) target = $region17
    $region16: #{tpu_custom_call.1} parent=1 // pred_region
      _
    $region17: #{tpu_custom_call.1} parent=1 // pred_fallthru
      _
    // Predicated region
    $region18: #{tpu_custom_call.1} parent=1 // pred_check
      _
    $region19: #{tpu_custom_call.1} parent=1 // pred_check_branch
      %22 = sbr.rel (0) target = $region21
    $region20: #{tpu_custom_call.1} parent=1 // pred_region
      _
    $region21: #{tpu_custom_call.1} parent=1 // pred_fallthru
      _
    %v23 = vld [vmem:[%s0] sm:$0xff]
    %v24 = vld [vmem:[%s0 + $0x8] sm:$0xff]
    %v25 = vld [vmem:[%s0 + $0x10] sm:$0xff]
    %v26 = vld [vmem:[%s0 + $0x18] sm:$0xff]
    %v27 = vld [vmem:[%s0 + $0x20] sm:$0xff]
    %v28 = vld [vmem:[%s0 + $0x28] sm:$0xff]
    %v29 = vld [vmem:[%s0 + $0x30] sm:$0xff]
    %v30 = vld [vmem:[%s0 + $0x38] sm:$0xff]
    %v31 = vld [vmem:[%s0 + $0x40] sm:$0xff]
    %v32 = vld [vmem:[%s0 + $0x48] sm:$0xff]
    %v33 = vld [vmem:[%s0 + $0x50] sm:$0xff]
    %v34 = vld [vmem:[%s0 + $0x58] sm:$0xff]
    %v35 = vld [vmem:[%s0 + $0x60] sm:$0xff]
    %v36 = vld [vmem:[%s0 + $0x68] sm:$0xff]
    %v37 = vld [vmem:[%s0 + $0x70] sm:$0xff]
    %v38 = vld [vmem:[%s0 + $0x78] sm:$0xff]
    %v39 = vld [vmem:[%s0 + $0x80] sm:$0xff]
    %v40 = vld [vmem:[%s0 + $0x88] sm:$0xff]
    %v41 = vld [vmem:[%s0 + $0x90] sm:$0xff]
    %v42 = vld [vmem:[%s0 + $0x98] sm:$0xff]
    %v43 = vld [vmem:[%s0 + $0xa0] sm:$0xff]
    %v44 = vld [vmem:[%s0 + $0xa8] sm:$0xff]
    %v45 = vld [vmem:[%s0 + $0xb0] sm:$0xff]
    %v46 = vld [vmem:[%s0 + $0xb8] sm:$0xff]
    %v47 = vld [vmem:[%s0 + $0xc0] sm:$0xff]
    %v48 = vld [vmem:[%s0 + $0xc8] sm:$0xff]
    %v49 = vld [vmem:[%s0 + $0xd0] sm:$0xff]
    %v50 = vld [vmem:[%s0 + $0xd8] sm:$0xff]
    %v51 = vld [vmem:[%s0 + $0xe0] sm:$0xff]
    %v52 = vld [vmem:[%s0 + $0xe8] sm:$0xff]
    %v53 = vld [vmem:[%s0 + $0xf0] sm:$0xff]
    %v54 = vld [vmem:[%s0 + $0xf8] sm:$0xff]
    %v55 = vld [vmem:[%s0 + $0x100] sm:$0xff]
    %v56 = vld [vmem:[%s0 + $0x108] sm:$0xff]
    %v57 = vld [vmem:[%s0 + $0x110] sm:$0xff]
    %v58 = vld [vmem:[%s0 + $0x118] sm:$0xff]
    %v59 = vld [vmem:[%s0 + $0x120] sm:$0xff]
    %v60 = vld [vmem:[%s0 + $0x128] sm:$0xff]
    %v61 = vld [vmem:[%s0 + $0x130] sm:$0xff]
    %v62 = vld [vmem:[%s0 + $0x138] sm:$0xff]
    %v63 = vld [vmem:[%s0 + $0x140] sm:$0xff]
    %v64 = vld [vmem:[%s0 + $0x148] sm:$0xff]
    %v65 = vld [vmem:[%s0 + $0x150] sm:$0xff]
    %v66 = vld [vmem:[%s0 + $0x158] sm:$0xff]
    %v67 = vld [vmem:[%s0 + $0x160] sm:$0xff]
    %v68 = vld [vmem:[%s0 + $0x168] sm:$0xff]
    %v69 = vld [vmem:[%s0 + $0x170] sm:$0xff]
    %v70 = vld [vmem:[%s0 + $0x178] sm:$0xff]
    %v71 = vld [vmem:[%s0 + $0x180] sm:$0xff]
    %v72 = vld [vmem:[%s0 + $0x188] sm:$0xff]
    %v73 = vld [vmem:[%s0 + $0x190] sm:$0xff]
    %v74 = vld [vmem:[%s0 + $0x198] sm:$0xff]
    %v75 = vld [vmem:[%s0 + $0x1a0] sm:$0xff]
    %v76 = vld [vmem:[%s0 + $0x1a8] sm:$0xff]
    %v77 = vld [vmem:[%s0 + $0x1b0] sm:$0xff]
    %v78 = vld [vmem:[%s0 + $0x1b8] sm:$0xff]
    %v79 = vld [vmem:[%s0 + $0x1c0] sm:$0xff]
    %v80 = vld [vmem:[%s0 + $0x1c8] sm:$0xff]
    %v81 = vld [vmem:[%s0 + $0x1d0] sm:$0xff]
    %v82 = vld [vmem:[%s0 + $0x1d8] sm:$0xff]
    %v83 = vld [vmem:[%s0 + $0x1e0] sm:$0xff]
    %v84 = vld [vmem:[%s0 + $0x1e8] sm:$0xff]
    %v85 = vld [vmem:[%s0 + $0x1f0] sm:$0xff]
    %v86 = vld [vmem:[%s0 + $0x1f8] sm:$0xff]
    %v87 = vmax.f32 %v23, %v31
    %v88 = vmax.f32 %v24, %v32
    %v89 = vmax.f32 %v25, %v33
    %v90 = vmax.f32 %v26, %v34
    %v91 = vmax.f32 %v27, %v35
    %v92 = vmax.f32 %v28, %v36
    %v93 = vmax.f32 %v29, %v37
    %v94 = vmax.f32 %v30, %v38
    %v95 = vmax.f32 %v55, %v63
    %v96 = vmax.f32 %v56, %v64
    %v97 = vmax.f32 %v57, %v65
    %v98 = vmax.f32 %v58, %v66
    %v99 = vmax.f32 %v59, %v67
    %v100 = vmax.f32 %v60, %v68
    %v101 = vmax.f32 %v61, %v69
    %v102 = vmax.f32 %v62, %v70
    %v103 = vmax.f32 %v39, %v47
    %v104 = vmax.f32 %v40, %v48
    %v105 = vmax.f32 %v41, %v49
    %v106 = vmax.f32 %v42, %v50
    %v107 = vmax.f32 %v43, %v51
    %v108 = vmax.f32 %v44, %v52
    %v109 = vmax.f32 %v45, %v53
    %v110 = vmax.f32 %v46, %v54
    %v111 = vmax.f32 %v71, %v79
    %v112 = vmax.f32 %v72, %v80
    %v113 = vmax.f32 %v73, %v81
    %v114 = vmax.f32 %v74, %v82
    %v115 = vmax.f32 %v75, %v83
    %v116 = vmax.f32 %v76, %v84
    %v117 = vmax.f32 %v77, %v85
    %v118 = vmax.f32 %v78, %v86
    %v119 = vmax.f32 %v87, %v103
    %v120 = vmax.f32 %v88, %v104
    %v121 = vmax.f32 %v89, %v105
    %v122 = vmax.f32 %v90, %v106
    %v123 = vmax.f32 %v91, %v107
    %v124 = vmax.f32 %v92, %v108
    %v125 = vmax.f32 %v93, %v109
    %v126 = vmax.f32 %v94, %v110
    %v127 = vmax.f32 %v95, %v111
    %v128 = vmax.f32 %v96, %v112
    %v129 = vmax.f32 %v97, %v113
    %v130 = vmax.f32 %v98, %v114
    %v131 = vmax.f32 %v99, %v115
    %v132 = vmax.f32 %v100, %v116
    %v133 = vmax.f32 %v101, %v117
    %v134 = vmax.f32 %v102, %v118
    %v152 = vrot.slane 0.0, 7
    %v153 = vrot.slane %v119, 7
    %v154 = vrot.slane %v120, 7
    %v155 = vrot.slane %v121, 7
    %v156 = vrot.slane %v122, 7
    %v157 = vrot.slane %v123, 7
    %v158 = vrot.slane %v124, 7
    %v159 = vrot.slane %v125, 7
    %v160 = vrot.slane %v126, 7
    %v161 = vrot.slane %v127, 7
    %v162 = vrot.slane %v128, 7
    %v163 = vrot.slane %v129, 7
    %v164 = vrot.slane %v130, 7
    %v165 = vrot.slane %v131, 7
    %v166 = vrot.slane %v132, 7
    %v167 = vrot.slane %v133, 7
    %v168 = vrot.slane %v134, 7
    %vm186 = vcmask 1040384
    %v187 = vsel %vm186, 0.0, %v152
    %v188 = vsel %vm186, 0.0, %v153
    %v189 = vsel %vm186, 0.0, %v154
    %v190 = vsel %vm186, 0.0, %v155
    %v191 = vsel %vm186, 0.0, %v156
    %v192 = vsel %vm186, 0.0, %v157
    %v193 = vsel %vm186, 0.0, %v158
    %v194 = vsel %vm186, 0.0, %v159
    %v195 = vsel %vm186, 0.0, %v160
    %v196 = vsel %vm186, 0.0, %v161
    %v197 = vsel %vm186, 0.0, %v162
    %v198 = vsel %vm186, 0.0, %v163
    %v199 = vsel %vm186, 0.0, %v164
    %v200 = vsel %vm186, 0.0, %v165
    %v201 = vsel %vm186, 0.0, %v166
    %v202 = vsel %vm186, 0.0, %v167
    %v203 = vsel %vm186, 0.0, %v168
    %v204 = vsel %vm186, %v152, 0.0
    %v205 = vsel %vm186, %v153, 0.0
    %v206 = vsel %vm186, %v154, 0.0
    %v207 = vsel %vm186, %v155, 0.0
    %v208 = vsel %vm186, %v156, 0.0
    %v209 = vsel %vm186, %v157, 0.0
    %v210 = vsel %vm186, %v158, 0.0
    %v211 = vsel %vm186, %v159, 0.0
    %v212 = vsel %vm186, %v160, 0.0
    %v213 = vsel %vm186, %v161, 0.0
    %v214 = vsel %vm186, %v162, 0.0
    %v215 = vsel %vm186, %v163, 0.0
    %v216 = vsel %vm186, %v164, 0.0
    %v217 = vsel %vm186, %v165, 0.0
    %v218 = vsel %vm186, %v166, 0.0
    %v219 = vsel %vm186, %v167, 0.0
    %v220 = vsel %vm186, %v168, 0.0
    %vm251 = vcmask 1046528
    %v252 = vrot.slane %v187, 1
    %v253 = vrot.slane %v204, 1
    %v254 = vsel %vm251, %v252, %v253
    %v255 = vrot.slane %v188, 1
    %v256 = vrot.slane %v205, 1
    %v257 = vsel %vm251, %v255, %v256
    %v258 = vrot.slane %v189, 1
    %v259 = vrot.slane %v206, 1
    %v260 = vsel %vm251, %v258, %v259
    %v261 = vrot.slane %v190, 1
    %v262 = vrot.slane %v207, 1
    %v263 = vsel %vm251, %v261, %v262
    %v264 = vrot.slane %v191, 1
    %v265 = vrot.slane %v208, 1
    %v266 = vsel %vm251, %v264, %v265
    %v267 = vrot.slane %v192, 1
    %v268 = vrot.slane %v209, 1
    %v269 = vsel %vm251, %v267, %v268
    %v270 = vrot.slane %v193, 1
    %v271 = vrot.slane %v210, 1
    %v272 = vsel %vm251, %v270, %v271
    %v273 = vrot.slane %v194, 1
    %v274 = vrot.slane %v211, 1
    %v275 = vsel %vm251, %v273, %v274
    %v276 = vrot.slane %v196, 1
    %v277 = vrot.slane %v213, 1
    %v278 = vsel %vm251, %v276, %v277
    %v279 = vrot.slane %v197, 1
    %v280 = vrot.slane %v214, 1
    %v281 = vsel %vm251, %v279, %v280
    %v282 = vrot.slane %v198, 1
    %v283 = vrot.slane %v215, 1
    %v284 = vsel %vm251, %v282, %v283
    %v285 = vrot.slane %v199, 1
    %v286 = vrot.slane %v216, 1
    %v287 = vsel %vm251, %v285, %v286
    %v288 = vrot.slane %v200, 1
    %v289 = vrot.slane %v217, 1
    %v290 = vsel %vm251, %v288, %v289
    %v291 = vrot.slane %v201, 1
    %v292 = vrot.slane %v218, 1
    %v293 = vsel %vm251, %v291, %v292
    %v294 = vrot.slane %v202, 1
    %v295 = vrot.slane %v219, 1
    %v296 = vsel %vm251, %v294, %v295
    %297 = vrot.lane.b32.xlu0 %v254, 4
    %v298 = vpop.permute.xlu0 %297
    %299 = vrot.lane.b32.xlu0 %v257, 4
    %v300 = vpop.permute.xlu0 %299
    %301 = vrot.lane.b32.xlu0 %v260, 4
    %v302 = vpop.permute.xlu0 %301
    %303 = vrot.lane.b32.xlu0 %v263, 4
    %v304 = vpop.permute.xlu0 %303
    %305 = vrot.lane.b32.xlu0 %v266, 4
    %v306 = vpop.permute.xlu0 %305
    %307 = vrot.lane.b32.xlu0 %v269, 4
    %v308 = vpop.permute.xlu0 %307
    %309 = vrot.lane.b32.xlu0 %v272, 4
    %v310 = vpop.permute.xlu0 %309
    %311 = vrot.lane.b32.xlu0 %v275, 4
    %v312 = vpop.permute.xlu0 %311
    %313 = vrot.lane.b32.xlu0 %v278, 4
    %v314 = vpop.permute.xlu0 %313
    %315 = vrot.lane.b32.xlu0 %v281, 4
    %v316 = vpop.permute.xlu0 %315
    %317 = vrot.lane.b32.xlu0 %v284, 4
    %v318 = vpop.permute.xlu0 %317
    %319 = vrot.lane.b32.xlu0 %v287, 4
    %v320 = vpop.permute.xlu0 %319
    %321 = vrot.lane.b32.xlu0 %v290, 4
    %v322 = vpop.permute.xlu0 %321
    %323 = vrot.lane.b32.xlu0 %v293, 4
    %v324 = vpop.permute.xlu0 %323
    %325 = vrot.lane.b32.xlu0 %v296, 4
    %v326 = vpop.permute.xlu0 %325
    %vm342 = vcmask 1045504
    %v343 = vrot.slane %v187, 2
    %v344 = vrot.slane %v204, 2
    %v345 = vsel %vm342, %v343, %v344
    %v346 = vrot.slane %v188, 2
    %v347 = vrot.slane %v205, 2
    %v348 = vsel %vm342, %v346, %v347
    %v349 = vrot.slane %v189, 2
    %v350 = vrot.slane %v206, 2
    %v351 = vsel %vm342, %v349, %v350
    %v352 = vrot.slane %v190, 2
    %v353 = vrot.slane %v207, 2
    %v354 = vsel %vm342, %v352, %v353
    %v355 = vrot.slane %v191, 2
    %v356 = vrot.slane %v208, 2
    %v357 = vsel %vm342, %v355, %v356
    %v358 = vrot.slane %v192, 2
    %v359 = vrot.slane %v209, 2
    %v360 = vsel %vm342, %v358, %v359
    %v361 = vrot.slane %v193, 2
    %v362 = vrot.slane %v210, 2
    %v363 = vsel %vm342, %v361, %v362
    %v364 = vrot.slane %v194, 2
    %v365 = vrot.slane %v211, 2
    %v366 = vsel %vm342, %v364, %v365
    %v367 = vrot.slane %v196, 2
    %v368 = vrot.slane %v213, 2
    %v369 = vsel %vm342, %v367, %v368
    %v370 = vrot.slane %v197, 2
    %v371 = vrot.slane %v214, 2
    %v372 = vsel %vm342, %v370, %v371
    %v373 = vrot.slane %v198, 2
    %v374 = vrot.slane %v215, 2
    %v375 = vsel %vm342, %v373, %v374
    %v376 = vrot.slane %v199, 2
    %v377 = vrot.slane %v216, 2
    %v378 = vsel %vm342, %v376, %v377
    %v379 = vrot.slane %v200, 2
    %v380 = vrot.slane %v217, 2
    %v381 = vsel %vm342, %v379, %v380
    %v382 = vrot.slane %v201, 2
    %v383 = vrot.slane %v218, 2
    %v384 = vsel %vm342, %v382, %v383
    %v385 = vrot.slane %v202, 2
    %v386 = vrot.slane %v219, 2
    %v387 = vsel %vm342, %v385, %v386
    %388 = vrot.lane.b32.xlu0 %v345, 8
    %v389 = vpop.permute.xlu0 %388
    %390 = vrot.lane.b32.xlu0 %v348, 8
    %v391 = vpop.permute.xlu0 %390
    %392 = vrot.lane.b32.xlu0 %v351, 8
    %v393 = vpop.permute.xlu0 %392
    %394 = vrot.lane.b32.xlu0 %v354, 8
    %v395 = vpop.permute.xlu0 %394
    %396 = vrot.lane.b32.xlu0 %v357, 8
    %v397 = vpop.permute.xlu0 %396
    %398 = vrot.lane.b32.xlu0 %v360, 8
    %v399 = vpop.permute.xlu0 %398
    %400 = vrot.lane.b32.xlu0 %v363, 8
    %v401 = vpop.permute.xlu0 %400
    %402 = vrot.lane.b32.xlu0 %v366, 8
    %v403 = vpop.permute.xlu0 %402
    %404 = vrot.lane.b32.xlu0 %v369, 8
    %v405 = vpop.permute.xlu0 %404
    %406 = vrot.lane.b32.xlu0 %v372, 8
    %v407 = vpop.permute.xlu0 %406
    %408 = vrot.lane.b32.xlu0 %v375, 8
    %v409 = vpop.permute.xlu0 %408
    %410 = vrot.lane.b32.xlu0 %v378, 8
    %v411 = vpop.permute.xlu0 %410
    %412 = vrot.lane.b32.xlu0 %v381, 8
    %v413 = vpop.permute.xlu0 %412
    %414 = vrot.lane.b32.xlu0 %v384, 8
    %v415 = vpop.permute.xlu0 %414
    %416 = vrot.lane.b32.xlu0 %v387, 8
    %v417 = vpop.permute.xlu0 %416
    %435 = vrot.lane.b32.xlu0 %v188, 12
    %v436 = vpop.permute.xlu0 %435
    %437 = vrot.lane.b32.xlu0 %v189, 12
    %v438 = vpop.permute.xlu0 %437
    %439 = vrot.lane.b32.xlu0 %v190, 12
    %v440 = vpop.permute.xlu0 %439
    %441 = vrot.lane.b32.xlu0 %v191, 12
    %v442 = vpop.permute.xlu0 %441
    %443 = vrot.lane.b32.xlu0 %v192, 12
    %v444 = vpop.permute.xlu0 %443
    %445 = vrot.lane.b32.xlu0 %v193, 12
    %v446 = vpop.permute.xlu0 %445
    %447 = vrot.lane.b32.xlu0 %v194, 12
    %v448 = vpop.permute.xlu0 %447
    %449 = vrot.lane.b32.xlu0 %v195, 12
    %v450 = vpop.permute.xlu0 %449
    %451 = vrot.lane.b32.xlu0 %v196, 12
    %v452 = vpop.permute.xlu0 %451
    %453 = vrot.lane.b32.xlu0 %v197, 12
    %v454 = vpop.permute.xlu0 %453
    %455 = vrot.lane.b32.xlu0 %v198, 12
    %v456 = vpop.permute.xlu0 %455
    %457 = vrot.lane.b32.xlu0 %v199, 12
    %v458 = vpop.permute.xlu0 %457
    %459 = vrot.lane.b32.xlu0 %v200, 12
    %v460 = vpop.permute.xlu0 %459
    %461 = vrot.lane.b32.xlu0 %v201, 12
    %v462 = vpop.permute.xlu0 %461
    %463 = vrot.lane.b32.xlu0 %v202, 12
    %v464 = vpop.permute.xlu0 %463
    %465 = vrot.lane.b32.xlu0 %v203, 12
    %v466 = vpop.permute.xlu0 %465
    %v485 = vrot.slane %v195, 1
    %v486 = vrot.slane %v212, 1
    %v487 = vsel %vm251, %v485, %v486
    %v488 = vrot.slane %v203, 1
    %v489 = vrot.slane %v220, 1
    %v490 = vsel %vm251, %v488, %v489
    %491 = vrot.lane.b32.xlu0 %v257, 16
    %v492 = vpop.permute.xlu0 %491
    %493 = vrot.lane.b32.xlu0 %v260, 16
    %v494 = vpop.permute.xlu0 %493
    %495 = vrot.lane.b32.xlu0 %v263, 16
    %v496 = vpop.permute.xlu0 %495
    %497 = vrot.lane.b32.xlu0 %v266, 16
    %v498 = vpop.permute.xlu0 %497
    %499 = vrot.lane.b32.xlu0 %v269, 16
    %v500 = vpop.permute.xlu0 %499
    %501 = vrot.lane.b32.xlu0 %v272, 16
    %v502 = vpop.permute.xlu0 %501
    %503 = vrot.lane.b32.xlu0 %v275, 16
    %v504 = vpop.permute.xlu0 %503
    %505 = vrot.lane.b32.xlu0 %v487, 16
    %v506 = vpop.permute.xlu0 %505
    %507 = vrot.lane.b32.xlu0 %v278, 16
    %v508 = vpop.permute.xlu0 %507
    %509 = vrot.lane.b32.xlu0 %v281, 16
    %v510 = vpop.permute.xlu0 %509
    %511 = vrot.lane.b32.xlu0 %v284, 16
    %v512 = vpop.permute.xlu0 %511
    %513 = vrot.lane.b32.xlu0 %v287, 16
    %v514 = vpop.permute.xlu0 %513
    %515 = vrot.lane.b32.xlu0 %v290, 16
    %v516 = vpop.permute.xlu0 %515
    %517 = vrot.lane.b32.xlu0 %v293, 16
    %v518 = vpop.permute.xlu0 %517
    %519 = vrot.lane.b32.xlu0 %v296, 16
    %v520 = vpop.permute.xlu0 %519
    %521 = vrot.lane.b32.xlu0 %v490, 16
    %v522 = vpop.permute.xlu0 %521
    %v539 = vrot.slane %v195, 2
    %v540 = vrot.slane %v212, 2
    %v541 = vsel %vm342, %v539, %v540
    %v542 = vrot.slane %v203, 2
    %v543 = vrot.slane %v220, 2
    %v544 = vsel %vm342, %v542, %v543
    %545 = vrot.lane.b32.xlu0 %v348, 20
    %v546 = vpop.permute.xlu0 %545
    %547 = vrot.lane.b32.xlu0 %v351, 20
    %v548 = vpop.permute.xlu0 %547
    %549 = vrot.lane.b32.xlu0 %v354, 20
    %v550 = vpop.permute.xlu0 %549
    %551 = vrot.lane.b32.xlu0 %v357, 20
    %v552 = vpop.permute.xlu0 %551
    %553 = vrot.lane.b32.xlu0 %v360, 20
    %v554 = vpop.permute.xlu0 %553
    %555 = vrot.lane.b32.xlu0 %v363, 20
    %v556 = vpop.permute.xlu0 %555
    %557 = vrot.lane.b32.xlu0 %v366, 20
    %v558 = vpop.permute.xlu0 %557
    %559 = vrot.lane.b32.xlu0 %v541, 20
    %v560 = vpop.permute.xlu0 %559
    %561 = vrot.lane.b32.xlu0 %v369, 20
    %v562 = vpop.permute.xlu0 %561
    %563 = vrot.lane.b32.xlu0 %v372, 20
    %v564 = vpop.permute.xlu0 %563
    %565 = vrot.lane.b32.xlu0 %v375, 20
    %v566 = vpop.permute.xlu0 %565
    %567 = vrot.lane.b32.xlu0 %v378, 20
    %v568 = vpop.permute.xlu0 %567
    %569 = vrot.lane.b32.xlu0 %v381, 20
    %v570 = vpop.permute.xlu0 %569
    %571 = vrot.lane.b32.xlu0 %v384, 20
    %v572 = vpop.permute.xlu0 %571
    %573 = vrot.lane.b32.xlu0 %v387, 20
    %v574 = vpop.permute.xlu0 %573
    %575 = vrot.lane.b32.xlu0 %v544, 20
    %v576 = vpop.permute.xlu0 %575
    %593 = vrot.lane.b32.xlu0 %v189, 24
    %v594 = vpop.permute.xlu0 %593
    %595 = vrot.lane.b32.xlu0 %v190, 24
    %v596 = vpop.permute.xlu0 %595
    %597 = vrot.lane.b32.xlu0 %v191, 24
    %v598 = vpop.permute.xlu0 %597
    %599 = vrot.lane.b32.xlu0 %v192, 24
    %v600 = vpop.permute.xlu0 %599
    %601 = vrot.lane.b32.xlu0 %v193, 24
    %v602 = vpop.permute.xlu0 %601
    %603 = vrot.lane.b32.xlu0 %v194, 24
    %v604 = vpop.permute.xlu0 %603
    %605 = vrot.lane.b32.xlu0 %v195, 24
    %v606 = vpop.permute.xlu0 %605
    %607 = vrot.lane.b32.xlu0 %v187, 24
    %v608 = vpop.permute.xlu0 %607
    %609 = vrot.lane.b32.xlu0 %v197, 24
    %v610 = vpop.permute.xlu0 %609
    %611 = vrot.lane.b32.xlu0 %v198, 24
    %v612 = vpop.permute.xlu0 %611
    %613 = vrot.lane.b32.xlu0 %v199, 24
    %v614 = vpop.permute.xlu0 %613
    %615 = vrot.lane.b32.xlu0 %v200, 24
    %v616 = vpop.permute.xlu0 %615
    %617 = vrot.lane.b32.xlu0 %v201, 24
    %v618 = vpop.permute.xlu0 %617
    %619 = vrot.lane.b32.xlu0 %v202, 24
    %v620 = vpop.permute.xlu0 %619
    %621 = vrot.lane.b32.xlu0 %v203, 24
    %v622 = vpop.permute.xlu0 %621
    %638 = vrot.lane.b32.xlu0 %v260, 28
    %v639 = vpop.permute.xlu0 %638
    %640 = vrot.lane.b32.xlu0 %v263, 28
    %v641 = vpop.permute.xlu0 %640
    %642 = vrot.lane.b32.xlu0 %v266, 28
    %v643 = vpop.permute.xlu0 %642
    %644 = vrot.lane.b32.xlu0 %v269, 28
    %v645 = vpop.permute.xlu0 %644
    %646 = vrot.lane.b32.xlu0 %v272, 28
    %v647 = vpop.permute.xlu0 %646
    %648 = vrot.lane.b32.xlu0 %v275, 28
    %v649 = vpop.permute.xlu0 %648
    %650 = vrot.lane.b32.xlu0 %v487, 28
    %v651 = vpop.permute.xlu0 %650
    %652 = vrot.lane.b32.xlu0 %v254, 28
    %v653 = vpop.permute.xlu0 %652
    %654 = vrot.lane.b32.xlu0 %v281, 28
    %v655 = vpop.permute.xlu0 %654
    %656 = vrot.lane.b32.xlu0 %v284, 28
    %v657 = vpop.permute.xlu0 %656
    %658 = vrot.lane.b32.xlu0 %v287, 28
    %v659 = vpop.permute.xlu0 %658
    %660 = vrot.lane.b32.xlu0 %v290, 28
    %v661 = vpop.permute.xlu0 %660
    %662 = vrot.lane.b32.xlu0 %v293, 28
    %v663 = vpop.permute.xlu0 %662
    %664 = vrot.lane.b32.xlu0 %v296, 28
    %v665 = vpop.permute.xlu0 %664
    %666 = vrot.lane.b32.xlu0 %v490, 28
    %v667 = vpop.permute.xlu0 %666
    %683 = vrot.lane.b32.xlu0 %v351, 32
    %v684 = vpop.permute.xlu0 %683
    %685 = vrot.lane.b32.xlu0 %v354, 32
    %v686 = vpop.permute.xlu0 %685
    %687 = vrot.lane.b32.xlu0 %v357, 32
    %v688 = vpop.permute.xlu0 %687
    %689 = vrot.lane.b32.xlu0 %v360, 32
    %v690 = vpop.permute.xlu0 %689
    %691 = vrot.lane.b32.xlu0 %v363, 32
    %v692 = vpop.permute.xlu0 %691
    %693 = vrot.lane.b32.xlu0 %v366, 32
    %v694 = vpop.permute.xlu0 %693
    %695 = vrot.lane.b32.xlu0 %v541, 32
    %v696 = vpop.permute.xlu0 %695
    %697 = vrot.lane.b32.xlu0 %v345, 32
    %v698 = vpop.permute.xlu0 %697
    %699 = vrot.lane.b32.xlu0 %v372, 32
    %v700 = vpop.permute.xlu0 %699
    %701 = vrot.lane.b32.xlu0 %v375, 32
    %v702 = vpop.permute.xlu0 %701
    %703 = vrot.lane.b32.xlu0 %v378, 32
    %v704 = vpop.permute.xlu0 %703
    %705 = vrot.lane.b32.xlu0 %v381, 32
    %v706 = vpop.permute.xlu0 %705
    %707 = vrot.lane.b32.xlu0 %v384, 32
    %v708 = vpop.permute.xlu0 %707
    %709 = vrot.lane.b32.xlu0 %v387, 32
    %v710 = vpop.permute.xlu0 %709
    %711 = vrot.lane.b32.xlu0 %v544, 32
    %v712 = vpop.permute.xlu0 %711
    %vm728 = vcmask 31744
    %v729 = vsel %vm728, %v187, %v298
    %v730 = vsel %vm728, %v188, %v300
    %v731 = vsel %vm728, %v189, %v302
    %v732 = vsel %vm728, %v190, %v304
    %v733 = vsel %vm728, %v191, %v306
    %v734 = vsel %vm728, %v192, %v308
    %v735 = vsel %vm728, %v193, %v310
    %v736 = vsel %vm728, %v194, %v312
    %v737 = vsel %vm728, %v196, %v314
    %v738 = vsel %vm728, %v197, %v316
    %v739 = vsel %vm728, %v198, %v318
    %v740 = vsel %vm728, %v199, %v320
    %v741 = vsel %vm728, %v200, %v322
    %v742 = vsel %vm728, %v201, %v324
    %v743 = vsel %vm728, %v202, %v326
    %vm744 = vcmask 64512
    %v745 = vsel %vm744, %v729, %v389
    %v746 = vsel %vm744, %v730, %v391
    %v747 = vsel %vm744, %v731, %v393
    %v748 = vsel %vm744, %v732, %v395
    %v749 = vsel %vm744, %v733, %v397
    %v750 = vsel %vm744, %v734, %v399
    %v751 = vsel %vm744, %v735, %v401
    %v752 = vsel %vm744, %v736, %v403
    %v753 = vsel %vm744, %v737, %v405
    %v754 = vsel %vm744, %v738, %v407
    %v755 = vsel %vm744, %v739, %v409
    %v756 = vsel %vm744, %v740, %v411
    %v757 = vsel %vm744, %v741, %v413
    %v758 = vsel %vm744, %v742, %v415
    %v759 = vsel %vm744, %v743, %v417
    %vm760 = vcmask 97280
    %v761 = vsel %vm760, %v745, %v436
    %v762 = vsel %vm760, %v746, %v438
    %v763 = vsel %vm760, %v747, %v440
    %v764 = vsel %vm760, %v748, %v442
    %v765 = vsel %vm760, %v749, %v444
    %v766 = vsel %vm760, %v750, %v446
    %v767 = vsel %vm760, %v751, %v448
    %v768 = vsel %vm760, %v752, %v450
    %v769 = vsel %vm760, %v745, %v452
    %v770 = vsel %vm760, %v753, %v454
    %v771 = vsel %vm760, %v754, %v456
    %v772 = vsel %vm760, %v755, %v458
    %v773 = vsel %vm760, %v756, %v460
    %v774 = vsel %vm760, %v757, %v462
    %v775 = vsel %vm760, %v758, %v464
    %v776 = vsel %vm760, %v759, %v466
    %vm777 = vcmask 130048
    %v778 = vsel %vm777, %v761, %v492
    %v779 = vsel %vm777, %v762, %v494
    %v780 = vsel %vm777, %v763, %v496
    %v781 = vsel %vm777, %v764, %v498
    %v782 = vsel %vm777, %v765, %v500
    %v783 = vsel %vm777, %v766, %v502
    %v784 = vsel %vm777, %v767, %v504
    %v785 = vsel %vm777, %v768, %v506
    %v786 = vsel %vm777, %v769, %v508
    %v787 = vsel %vm777, %v770, %v510
    %v788 = vsel %vm777, %v771, %v512
    %v789 = vsel %vm777, %v772, %v514
    %v790 = vsel %vm777, %v773, %v516
    %v791 = vsel %vm777, %v774, %v518
    %v792 = vsel %vm777, %v775, %v520
    %v793 = vsel %vm777, %v776, %v522
    %vm794 = vcmask 162816
    %v795 = vsel %vm794, %v778, %v546
    %v796 = vsel %vm794, %v779, %v548
    %v797 = vsel %vm794, %v780, %v550
    %v798 = vsel %vm794, %v781, %v552
    %v799 = vsel %vm794, %v782, %v554
    %v800 = vsel %vm794, %v783, %v556
    %v801 = vsel %vm794, %v784, %v558
    %v802 = vsel %vm794, %v785, %v560
    %v803 = vsel %vm794, %v786, %v562
    %v804 = vsel %vm794, %v787, %v564
    %v805 = vsel %vm794, %v788, %v566
    %v806 = vsel %vm794, %v789, %v568
    %v807 = vsel %vm794, %v790, %v570
    %v808 = vsel %vm794, %v791, %v572
    %v809 = vsel %vm794, %v792, %v574
    %v810 = vsel %vm794, %v793, %v576
    %vm811 = vcmask 195584
    %v812 = vsel %vm811, %v795, %v594
    %v813 = vsel %vm811, %v796, %v596
    %v814 = vsel %vm811, %v797, %v598
    %v815 = vsel %vm811, %v798, %v600
    %v816 = vsel %vm811, %v799, %v602
    %v817 = vsel %vm811, %v800, %v604
    %v818 = vsel %vm811, %v801, %v606
    %v819 = vsel %vm811, %v802, %v608
    %v820 = vsel %vm811, %v803, %v610
    %v821 = vsel %vm811, %v804, %v612
    %v822 = vsel %vm811, %v805, %v614
    %v823 = vsel %vm811, %v806, %v616
    %v824 = vsel %vm811, %v807, %v618
    %v825 = vsel %vm811, %v808, %v620
    %v826 = vsel %vm811, %v809, %v622
    %v827 = vsel %vm811, %v810, %v608
    %vm828 = vcmask 228352
    %v829 = vsel %vm828, %v812, %v639
    %v830 = vsel %vm828, %v813, %v641
    %v831 = vsel %vm828, %v814, %v643
    %v832 = vsel %vm828, %v815, %v645
    %v833 = vsel %vm828, %v816, %v647
    %v834 = vsel %vm828, %v817, %v649
    %v835 = vsel %vm828, %v818, %v651
    %v836 = vsel %vm828, %v819, %v653
    %v837 = vsel %vm828, %v820, %v655
    %v838 = vsel %vm828, %v821, %v657
    %v839 = vsel %vm828, %v822, %v659
    %v840 = vsel %vm828, %v823, %v661
    %v841 = vsel %vm828, %v824, %v663
    %v842 = vsel %vm828, %v825, %v665
    %v843 = vsel %vm828, %v826, %v667
    %v844 = vsel %vm828, %v827, %v653
    %vm845 = vcmask 261120
    %v846 = vsel %vm845, %v829, %v684
    %v847 = vsel %vm845, %v830, %v686
    %v848 = vsel %vm845, %v831, %v688
    %v849 = vsel %vm845, %v832, %v690
    %v850 = vsel %vm845, %v833, %v692
    %v851 = vsel %vm845, %v834, %v694
    %v852 = vsel %vm845, %v835, %v696
    %v853 = vsel %vm845, %v836, %v698
    %v854 = vsel %vm845, %v837, %v700
    %v855 = vsel %vm845, %v838, %v702
    %v856 = vsel %vm845, %v839, %v704
    %v857 = vsel %vm845, %v840, %v706
    %v858 = vsel %vm845, %v841, %v708
    %v859 = vsel %vm845, %v842, %v710
    %v860 = vsel %vm845, %v843, %v712
    %v861 = vsel %vm845, %v844, %v698
    %v862 = vld [vmem:[%s1] sm:$0xff]
    %v863 = vld [vmem:[%s1 + $0x8] sm:$0xff]
    %v864 = vld [vmem:[%s1 + $0x10] sm:$0xff]
    %v865 = vld [vmem:[%s1 + $0x18] sm:$0xff]
    %v866 = vld [vmem:[%s1 + $0x20] sm:$0xf]
    %vm867 = vcmask 293888
    %v869 = vsel %vm867, %v846, 0
    %v872 = vsel %vm867, %v847, 0
    %v875 = vsel %vm867, %v848, 0
    %v878 = vsel %vm867, %v849, 0
    %v881 = vsel %vm867, %v850, 0
    %v884 = vsel %vm867, %v851, 0
    %v887 = vsel %vm867, %v852, 0
    %v890 = vsel %vm867, %v853, 0
    %v893 = vsel %vm867, %v854, 0
    %v896 = vsel %vm867, %v855, 0
    %v899 = vsel %vm867, %v856, 0
    %v902 = vsel %vm867, %v857, 0
    %v905 = vsel %vm867, %v858, 0
    %v908 = vsel %vm867, %v859, 0
    %v911 = vsel %vm867, %v860, 0
    %v914 = vsel %vm867, %v861, 0
    %vm916 = vcmask 1043456
    %v918 = vsel %vm916, %v866, 0
    %920 = vmatprep.subr.mxu0 0.0
    %921 = vmatpush1.msra.mxu0 0.0
    %922 = vmatprep.subr.mxu0 0.0
    %923 = vmatpush1.msra.mxu0 0.0
    %924 = vmatprep.subr.mxu0 0.0
    %925 = vmatpush1.msra.mxu0 0.0
    %926 = vmatprep.subr.mxu0 0.0
    %927 = vmatpush1.msra.mxu0 0.0
    %928 = vmatprep.subr.mxu0 0.0
    %929 = vmatpush1.msra.mxu0 0.0
    %930 = vmatprep.subr.mxu0 0.0
    %931 = vmatpush1.msra.mxu0 0.0
    %932 = vmatprep.subr.mxu0 0.0
    %933 = vmatpush1.msra.mxu0 0.0
    %934 = vmatprep.subr.mxu0 0.0
    %935 = vmatpush1.msra.mxu0 0.0
    %936 = vmatprep.subr.mxu0 0.0
    %937 = vmatpush1.msra.mxu0 0.0
    %938 = vmatprep.subr.mxu0 0.0
    %939 = vmatpush1.msra.mxu0 0.0
    %940 = vmatprep.subr.mxu0 0.0
    %941 = vmatpush1.msra.mxu0 0.0
    %942 = vmatprep.subr.mxu0 0.0
    %943 = vmatpush1.msra.mxu0 %v918
    %944 = vmatprep.subr.mxu0 0.0
    %945 = vmatpush1.msra.mxu0 %v865
    %946 = vmatprep.subr.mxu0 0.0
    %947 = vmatpush1.msra.mxu0 %v864
    %948 = vmatprep.subr.mxu0 0.0
    %949 = vmatpush1.msra.mxu0 %v863
    %950 = vmatprep.subr.mxu0 0.0
    %951 = vmatpush1.msra.mxu0 %v862
    %952 = vmatprep.subr.mxu0 0.0
    %953 = vmatpush2.msra.mxu0 0.0
    %954 = vmatprep.subr.mxu0 0.0
    %955 = vmatpush2.msra.mxu0 0.0
    %956 = vmatprep.subr.mxu0 0.0
    %957 = vmatpush2.msra.mxu0 0.0
    %958 = vmatprep.subr.mxu0 0.0
    %959 = vmatpush2.msra.mxu0 0.0
    %960 = vmatprep.subr.mxu0 0.0
    %961 = vmatpush2.msra.mxu0 0.0
    %962 = vmatprep.subr.mxu0 0.0
    %963 = vmatpush2.msra.mxu0 0.0
    %964 = vmatprep.subr.mxu0 0.0
    %965 = vmatpush2.msra.mxu0 0.0
    %966 = vmatprep.subr.mxu0 0.0
    %967 = vmatpush2.msra.mxu0 0.0
    %968 = vmatprep.subr.mxu0 0.0
    %969 = vmatpush2.msra.mxu0 0.0
    %970 = vmatprep.subr.mxu0 0.0
    %971 = vmatpush2.msra.mxu0 0.0
    %972 = vmatprep.subr.mxu0 0.0
    %973 = vmatpush2.msra.mxu0 0.0
    %974 = vmatprep.subr.mxu0 0.0
    %975 = vmatpush2.msra.mxu0 0.0
    %976 = vmatprep.subr.mxu0 0.0
    %977 = vmatpush2.msra.mxu0 0.0
    %978 = vmatprep.subr.mxu0 0.0
    %979 = vmatpush2.msra.mxu0 0.0
    %980 = vmatprep.subr.mxu0 0.0
    %981 = vmatpush2.msra.mxu0 0.0
    %982 = vmatprep.subr.mxu0 0.0
    %983 = vmatpush2.msra.mxu0 0.0
    %984 = vmatprep.mubr.f32.mxu0 0.0
    %985 = vmatmul.mubr.f32.gmra.mxu0 %v869
    %v986 = vpop.f32.mrf.mxu0
    %v987 = vadd.f32 0.0, %v986
    %v988 = vpop.f32.mrf.mxu0
    %989 = vmatprep.mubr.f32.mxu0 0.0
    %990 = vmatmul.mubr.f32.gmra.mxu0 %v872
    %v991 = vpop.f32.mrf.mxu0
    %v992 = vadd.f32 0.0, %v991
    %v993 = vpop.f32.mrf.mxu0
    %994 = vmatprep.mubr.f32.mxu0 0.0
    %995 = vmatmul.mubr.f32.gmra.mxu0 %v875
    %v996 = vpop.f32.mrf.mxu0
    %v997 = vadd.f32 0.0, %v996
    %v998 = vpop.f32.mrf.mxu0
    %999 = vmatprep.mubr.f32.mxu0 0.0
    %1000 = vmatmul.mubr.f32.gmra.mxu0 %v878
    %v1001 = vpop.f32.mrf.mxu0
    %v1002 = vadd.f32 0.0, %v1001
    %v1003 = vpop.f32.mrf.mxu0
    %1004 = vmatprep.mubr.f32.mxu0 0.0
    %1005 = vmatmul.mubr.f32.gmra.mxu0 %v881
    %v1006 = vpop.f32.mrf.mxu0
    %v1007 = vadd.f32 0.0, %v1006
    %v1008 = vpop.f32.mrf.mxu0
    %1009 = vmatprep.mubr.f32.mxu0 0.0
    %1010 = vmatmul.mubr.f32.gmra.mxu0 %v884
    %v1011 = vpop.f32.mrf.mxu0
    %v1012 = vadd.f32 0.0, %v1011
    %v1013 = vpop.f32.mrf.mxu0
    %1014 = vmatprep.mubr.f32.mxu0 0.0
    %1015 = vmatmul.mubr.f32.gmra.mxu0 %v887
    %v1016 = vpop.f32.mrf.mxu0
    %v1017 = vadd.f32 0.0, %v1016
    %v1018 = vpop.f32.mrf.mxu0
    %1019 = vmatprep.mubr.f32.mxu0 0.0
    %1020 = vmatmul.mubr.f32.gmra.mxu0 %v890
    %v1021 = vpop.f32.mrf.mxu0
    %v1022 = vadd.f32 0.0, %v1021
    %v1023 = vpop.f32.mrf.mxu0
    %1024 = vmatprep.mubr.f32.mxu0 0.0
    %1025 = vmatmul.mubr.f32.gmra.mxu0 %v893
    %v1026 = vpop.f32.mrf.mxu0
    %v1027 = vadd.f32 0.0, %v1026
    %v1028 = vpop.f32.mrf.mxu0
    %1029 = vmatprep.mubr.f32.mxu0 0.0
    %1030 = vmatmul.mubr.f32.gmra.mxu0 %v896
    %v1031 = vpop.f32.mrf.mxu0
    %v1032 = vadd.f32 0.0, %v1031
    %v1033 = vpop.f32.mrf.mxu0
    %1034 = vmatprep.mubr.f32.mxu0 0.0
    %1035 = vmatmul.mubr.f32.gmra.mxu0 %v899
    %v1036 = vpop.f32.mrf.mxu0
    %v1037 = vadd.f32 0.0, %v1036
    %v1038 = vpop.f32.mrf.mxu0
    %1039 = vmatprep.mubr.f32.mxu0 0.0
    %1040 = vmatmul.mubr.f32.gmra.mxu0 %v902
    %v1041 = vpop.f32.mrf.mxu0
    %v1042 = vadd.f32 0.0, %v1041
    %v1043 = vpop.f32.mrf.mxu0
    %1044 = vmatprep.mubr.f32.mxu0 0.0
    %1045 = vmatmul.mubr.f32.gmra.mxu0 %v905
    %v1046 = vpop.f32.mrf.mxu0
    %v1047 = vadd.f32 0.0, %v1046
    %v1048 = vpop.f32.mrf.mxu0
    %1049 = vmatprep.mubr.f32.mxu0 0.0
    %1050 = vmatmul.mubr.f32.gmra.mxu0 %v908
    %v1051 = vpop.f32.mrf.mxu0
    %v1052 = vadd.f32 0.0, %v1051
    %v1053 = vpop.f32.mrf.mxu0
    %1054 = vmatprep.mubr.f32.mxu0 0.0
    %1055 = vmatmul.mubr.f32.gmra.mxu0 %v911
    %v1056 = vpop.f32.mrf.mxu0
    %v1057 = vadd.f32 0.0, %v1056
    %v1058 = vpop.f32.mrf.mxu0
    %1059 = vmatprep.mubr.f32.mxu0 0.0
    %1060 = vmatmul.mubr.f32.gmra.mxu0 %v914
    %v1061 = vpop.f32.mrf.mxu0
    %v1062 = vadd.f32 0.0, %v1061
    %v1063 = vpop.f32.mrf.mxu0
    %1064 = vdwg.mxu0
    %s1065 = sld [smem:[#allocation2]]
    %v1066 = vsel %vm744, %v987, 0.0
    %v1067 = vsel %vm744, %v992, 0.0
    %v1068 = vadd.f32 %v1066, %v1067
    %v1069 = vsel %vm744, %v997, 0.0
    %v1070 = vadd.f32 %v1068, %v1069
    %v1071 = vsel %vm744, %v1002, 0.0
    %v1072 = vadd.f32 %v1070, %v1071
    %v1073 = vsel %vm744, %v1007, 0.0
    %v1074 = vadd.f32 %v1072, %v1073
    %v1075 = vsel %vm744, %v1012, 0.0
    %v1076 = vadd.f32 %v1074, %v1075
    %v1077 = vsel %vm744, %v1017, 0.0
    %v1078 = vadd.f32 %v1076, %v1077
    %v1079 = vsel %vm744, %v1022, 0.0
    %v1080 = vadd.f32 %v1078, %v1079
    %v1081 = vrot.slane %v1080, 4
    %v1082 = vadd.f32 %v1080, %v1081
    %v1083 = vrot.slane %v1082, 2
    %v1084 = vadd.f32 %v1082, %v1083
    %v1085 = vrot.slane %v1084, 1
    %v1086 = vadd.f32 %v1084, %v1085
    %v1087 = vsel %vm744, %v1027, 0.0
    %v1088 = vsel %vm744, %v1032, 0.0
    %v1089 = vadd.f32 %v1087, %v1088
    %v1090 = vsel %vm744, %v1037, 0.0
    %v1091 = vadd.f32 %v1089, %v1090
    %v1092 = vsel %vm744, %v1042, 0.0
    %v1093 = vadd.f32 %v1091, %v1092
    %v1094 = vsel %vm744, %v1047, 0.0
    %v1095 = vadd.f32 %v1093, %v1094
    %v1096 = vsel %vm744, %v1052, 0.0
    %v1097 = vadd.f32 %v1095, %v1096
    %v1098 = vsel %vm744, %v1057, 0.0
    %v1099 = vadd.f32 %v1097, %v1098
    %v1100 = vsel %vm744, %v1062, 0.0
    %v1101 = vadd.f32 %v1099, %v1100
    %v1102 = vrot.slane %v1101, 4
    %v1103 = vadd.f32 %v1101, %v1102
    %v1104 = vrot.slane %v1103, 2
    %v1105 = vadd.f32 %v1103, %v1104
    %v1106 = vrot.slane %v1105, 1
    %v1107 = vadd.f32 %v1105, %v1106
    %v1108 = vmul.f32 %v987, %v987
    %v1109 = vmul.f32 %v992, %v992
    %v1110 = vmul.f32 %v997, %v997
    %v1111 = vmul.f32 %v1002, %v1002
    %v1112 = vmul.f32 %v1007, %v1007
    %v1113 = vmul.f32 %v1012, %v1012
    %v1114 = vmul.f32 %v1017, %v1017
    %v1115 = vmul.f32 %v1022, %v1022
    %v1116 = vmul.f32 %v1027, %v1027
    %v1117 = vmul.f32 %v1032, %v1032
    %v1118 = vmul.f32 %v1037, %v1037
    %v1119 = vmul.f32 %v1042, %v1042
    %v1120 = vmul.f32 %v1047, %v1047
    %v1121 = vmul.f32 %v1052, %v1052
    %v1122 = vmul.f32 %v1057, %v1057
    %v1123 = vmul.f32 %v1062, %v1062
    %v1124 = vsel %vm744, %v1108, 0.0
    %v1125 = vsel %vm744, %v1109, 0.0
    %v1126 = vadd.f32 %v1124, %v1125
    %v1127 = vsel %vm744, %v1110, 0.0
    %v1128 = vadd.f32 %v1126, %v1127
    %v1129 = vsel %vm744, %v1111, 0.0
    %v1130 = vadd.f32 %v1128, %v1129
    %v1131 = vsel %vm744, %v1112, 0.0
    %v1132 = vadd.f32 %v1130, %v1131
    %v1133 = vsel %vm744, %v1113, 0.0
    %v1134 = vadd.f32 %v1132, %v1133
    %v1135 = vsel %vm744, %v1114, 0.0
    %v1136 = vadd.f32 %v1134, %v1135
    %v1137 = vsel %vm744, %v1115, 0.0
    %v1138 = vadd.f32 %v1136, %v1137
    %v1139 = vrot.slane %v1138, 4
    %v1140 = vadd.f32 %v1138, %v1139
    %v1141 = vrot.slane %v1140, 2
    %v1142 = vadd.f32 %v1140, %v1141
    %v1143 = vrot.slane %v1142, 1
    %v1144 = vadd.f32 %v1142, %v1143
    %v1145 = vsel %vm744, %v1116, 0.0
    %v1146 = vsel %vm744, %v1117, 0.0
    %v1147 = vadd.f32 %v1145, %v1146
    %v1148 = vsel %vm744, %v1118, 0.0
    %v1149 = vadd.f32 %v1147, %v1148
    %v1150 = vsel %vm744, %v1119, 0.0
    %v1151 = vadd.f32 %v1149, %v1150
    %v1152 = vsel %vm744, %v1120, 0.0
    %v1153 = vadd.f32 %v1151, %v1152
    %v1154 = vsel %vm744, %v1121, 0.0
    %v1155 = vadd.f32 %v1153, %v1154
    %v1156 = vsel %vm744, %v1122, 0.0
    %v1157 = vadd.f32 %v1155, %v1156
    %v1158 = vsel %vm744, %v1123, 0.0
    %v1159 = vadd.f32 %v1157, %v1158
    %v1160 = vrot.slane %v1159, 4
    %v1161 = vadd.f32 %v1159, %v1160
    %v1162 = vrot.slane %v1161, 2
    %v1163 = vadd.f32 %v1161, %v1162
    %v1164 = vrot.slane %v1163, 1
    %v1165 = vadd.f32 %v1163, %v1164
    %v1166 = vmul.f32 %v1086, 0.015625
    %v1167 = vmul.f32 %v1107, 0.015625
    %v1168 = vmul.f32 %v1144, 0.015625
    %v1169 = vmul.f32 %v1165, 0.015625
    %v1170 = vmul.f32 %v1166, %v1166
    %v1171 = vmul.f32 %v1167, %v1167
    %v1172 = vsub.f32 %v1168, %v1170
    %v1173 = vsub.f32 %v1169, %v1171
    %v1174 = vmax.f32 %v1172, 0.0
    %v1175 = vmax.f32 %v1173, 0.0
    %v1176 = vsub.f32 %v987, %v1166
    %v1177 = vsub.f32 %v992, %v1166
    %v1178 = vsub.f32 %v997, %v1166
    %v1179 = vsub.f32 %v1002, %v1166
    %v1180 = vsub.f32 %v1007, %v1166
    %v1181 = vsub.f32 %v1012, %v1166
    %v1182 = vsub.f32 %v1017, %v1166
    %v1183 = vsub.f32 %v1022, %v1166
    %v1184 = vsub.f32 %v1027, %v1167
    %v1185 = vsub.f32 %v1032, %v1167
    %v1186 = vsub.f32 %v1037, %v1167
    %v1187 = vsub.f32 %v1042, %v1167
    %v1188 = vsub.f32 %v1047, %v1167
    %v1189 = vsub.f32 %v1052, %v1167
    %v1190 = vsub.f32 %v1057, %v1167
    %v1191 = vsub.f32 %v1062, %v1167
    %v1192 = vadd.f32 %v1174, 1e-05
    %v1193 = vadd.f32 %v1175, 1e-05
    %v1194 = vrsqrt.pop %v1192
    %v1195 = vrsqrt.pop %v1193
    %v1196 = vmul.f32 %v1176, %v1194
    %v1197 = vmul.f32 %v1177, %v1194
    %v1198 = vmul.f32 %v1178, %v1194
    %v1199 = vmul.f32 %v1179, %v1194
    %v1200 = vmul.f32 %v1180, %v1194
    %v1201 = vmul.f32 %v1181, %v1194
    %v1202 = vmul.f32 %v1182, %v1194
    %v1203 = vmul.f32 %v1183, %v1194
    %v1204 = vmul.f32 %v1184, %v1195
    %v1205 = vmul.f32 %v1185, %v1195
    %v1206 = vmul.f32 %v1186, %v1195
    %v1207 = vmul.f32 %v1187, %v1195
    %v1208 = vmul.f32 %v1188, %v1195
    %v1209 = vmul.f32 %v1189, %v1195
    %v1210 = vmul.f32 %v1190, %v1195
    %v1211 = vmul.f32 %v1191, %v1195
    %vm1212 = vcmp.ge.f32.partialorder %v1196, 0.0
    %vm1213 = vcmp.ge.f32.partialorder %v1197, 0.0
    %vm1214 = vcmp.ge.f32.partialorder %v1198, 0.0
    %vm1215 = vcmp.ge.f32.partialorder %v1199, 0.0
    %vm1216 = vcmp.ge.f32.partialorder %v1200, 0.0
    %vm1217 = vcmp.ge.f32.partialorder %v1201, 0.0
    %vm1218 = vcmp.ge.f32.partialorder %v1202, 0.0
    %vm1219 = vcmp.ge.f32.partialorder %v1203, 0.0
    %vm1220 = vcmp.ge.f32.partialorder %v1204, 0.0
    %vm1221 = vcmp.ge.f32.partialorder %v1205, 0.0
    %vm1222 = vcmp.ge.f32.partialorder %v1206, 0.0
    %vm1223 = vcmp.ge.f32.partialorder %v1207, 0.0
    %vm1224 = vcmp.ge.f32.partialorder %v1208, 0.0
    %vm1225 = vcmp.ge.f32.partialorder %v1209, 0.0
    %vm1226 = vcmp.ge.f32.partialorder %v1210, 0.0
    %vm1227 = vcmp.ge.f32.partialorder %v1211, 0.0
    %v1228 = vstv %s1065
    %v1229 = vmul.f32 %v1228, %v1196
    %v1230 = vmul.f32 %v1228, %v1197
    %v1231 = vmul.f32 %v1228, %v1198
    %v1232 = vmul.f32 %v1228, %v1199
    %v1233 = vmul.f32 %v1228, %v1200
    %v1234 = vmul.f32 %v1228, %v1201
    %v1235 = vmul.f32 %v1228, %v1202
    %v1236 = vmul.f32 %v1228, %v1203
    %v1237 = vmul.f32 %v1228, %v1204
    %v1238 = vmul.f32 %v1228, %v1205
    %v1239 = vmul.f32 %v1228, %v1206
    %v1240 = vmul.f32 %v1228, %v1207
    %v1241 = vmul.f32 %v1228, %v1208
    %v1242 = vmul.f32 %v1228, %v1209
    %v1243 = vmul.f32 %v1228, %v1210
    %v1244 = vmul.f32 %v1228, %v1211
    %v1245 = vsel %vm1212, %v1196, %v1229
    %v1246 = vsel %vm1213, %v1197, %v1230
    %v1247 = vsel %vm1214, %v1198, %v1231
    %v1248 = vsel %vm1215, %v1199, %v1232
    %v1249 = vsel %vm1216, %v1200, %v1233
    %v1250 = vsel %vm1217, %v1201, %v1234
    %v1251 = vsel %vm1218, %v1202, %v1235
    %v1252 = vsel %vm1219, %v1203, %v1236
    %v1253 = vsel %vm1220, %v1204, %v1237
    %v1254 = vsel %vm1221, %v1205, %v1238
    %v1255 = vsel %vm1222, %v1206, %v1239
    %v1256 = vsel %vm1223, %v1207, %v1240
    %v1257 = vsel %vm1224, %v1208, %v1241
    %v1258 = vsel %vm1225, %v1209, %v1242
    %v1259 = vsel %vm1226, %v1210, %v1243
    %v1260 = vsel %vm1227, %v1211, %v1244
    %v1277 = vrot.slane %v1245, 7
    %v1278 = vrot.slane %v1246, 7
    %v1279 = vrot.slane %v1247, 7
    %v1280 = vrot.slane %v1248, 7
    %v1281 = vrot.slane %v1249, 7
    %v1282 = vrot.slane %v1250, 7
    %v1283 = vrot.slane %v1251, 7
    %v1284 = vrot.slane %v1252, 7
    %v1285 = vrot.slane %v1253, 7
    %v1286 = vrot.slane %v1254, 7
    %v1287 = vrot.slane %v1255, 7
    %v1288 = vrot.slane %v1256, 7
    %v1289 = vrot.slane %v1257, 7
    %v1290 = vrot.slane %v1258, 7
    %v1291 = vrot.slane %v1259, 7
    %v1292 = vrot.slane %v1260, 7
    %v1309 = vsel %vm186, 0.0, %v1277
    %v1310 = vsel %vm186, 0.0, %v1278
    %v1311 = vsel %vm186, 0.0, %v1279
    %v1312 = vsel %vm186, 0.0, %v1280
    %v1313 = vsel %vm186, 0.0, %v1281
    %v1314 = vsel %vm186, 0.0, %v1282
    %v1315 = vsel %vm186, 0.0, %v1283
    %v1316 = vsel %vm186, 0.0, %v1284
    %v1317 = vsel %vm186, 0.0, %v1285
    %v1318 = vsel %vm186, 0.0, %v1286
    %v1319 = vsel %vm186, 0.0, %v1287
    %v1320 = vsel %vm186, 0.0, %v1288
    %v1321 = vsel %vm186, 0.0, %v1289
    %v1322 = vsel %vm186, 0.0, %v1290
    %v1323 = vsel %vm186, 0.0, %v1291
    %v1324 = vsel %vm186, 0.0, %v1292
    %v1325 = vsel %vm186, %v1277, 0.0
    %v1326 = vsel %vm186, %v1278, 0.0
    %v1327 = vsel %vm186, %v1279, 0.0
    %v1328 = vsel %vm186, %v1280, 0.0
    %v1329 = vsel %vm186, %v1281, 0.0
    %v1330 = vsel %vm186, %v1282, 0.0
    %v1331 = vsel %vm186, %v1283, 0.0
    %v1332 = vsel %vm186, %v1284, 0.0
    %v1333 = vsel %vm186, %v1285, 0.0
    %v1334 = vsel %vm186, %v1286, 0.0
    %v1335 = vsel %vm186, %v1287, 0.0
    %v1336 = vsel %vm186, %v1288, 0.0
    %v1337 = vsel %vm186, %v1289, 0.0
    %v1338 = vsel %vm186, %v1290, 0.0
    %v1339 = vsel %vm186, %v1291, 0.0
    %v1340 = vsel %vm186, %v1292, 0.0
    %v1369 = vrot.slane %v1309, 1
    %v1370 = vrot.slane %v1325, 1
    %v1371 = vsel %vm251, %v1369, %v1370
    %v1372 = vrot.slane %v1310, 1
    %v1373 = vrot.slane %v1326, 1
    %v1374 = vsel %vm251, %v1372, %v1373
    %v1375 = vrot.slane %v1311, 1
    %v1376 = vrot.slane %v1327, 1
    %v1377 = vsel %vm251, %v1375, %v1376
    %v1378 = vrot.slane %v1312, 1
    %v1379 = vrot.slane %v1328, 1
    %v1380 = vsel %vm251, %v1378, %v1379
    %v1381 = vrot.slane %v1313, 1
    %v1382 = vrot.slane %v1329, 1
    %v1383 = vsel %vm251, %v1381, %v1382
    %v1384 = vrot.slane %v1314, 1
    %v1385 = vrot.slane %v1330, 1
    %v1386 = vsel %vm251, %v1384, %v1385
    %v1387 = vrot.slane %v1315, 1
    %v1388 = vrot.slane %v1331, 1
    %v1389 = vsel %vm251, %v1387, %v1388
    %v1390 = vrot.slane %v1317, 1
    %v1391 = vrot.slane %v1333, 1
    %v1392 = vsel %vm251, %v1390, %v1391
    %v1393 = vrot.slane %v1318, 1
    %v1394 = vrot.slane %v1334, 1
    %v1395 = vsel %vm251, %v1393, %v1394
    %v1396 = vrot.slane %v1319, 1
    %v1397 = vrot.slane %v1335, 1
    %v1398 = vsel %vm251, %v1396, %v1397
    %v1399 = vrot.slane %v1320, 1
    %v1400 = vrot.slane %v1336, 1
    %v1401 = vsel %vm251, %v1399, %v1400
    %v1402 = vrot.slane %v1321, 1
    %v1403 = vrot.slane %v1337, 1
    %v1404 = vsel %vm251, %v1402, %v1403
    %v1405 = vrot.slane %v1322, 1
    %v1406 = vrot.slane %v1338, 1
    %v1407 = vsel %vm251, %v1405, %v1406
    %v1408 = vrot.slane %v1323, 1
    %v1409 = vrot.slane %v1339, 1
    %v1410 = vsel %vm251, %v1408, %v1409
    %1411 = vrot.lane.b32.xlu0 %v254, 8
    %v1412 = vpop.permute.xlu0 %1411
    %1413 = vrot.lane.b32.xlu0 %v1371, 8
    %v1414 = vpop.permute.xlu0 %1413
    %1415 = vrot.lane.b32.xlu0 %v1374, 8
    %v1416 = vpop.permute.xlu0 %1415
    %1417 = vrot.lane.b32.xlu0 %v1377, 8
    %v1418 = vpop.permute.xlu0 %1417
    %1419 = vrot.lane.b32.xlu0 %v1380, 8
    %v1420 = vpop.permute.xlu0 %1419
    %1421 = vrot.lane.b32.xlu0 %v1383, 8
    %v1422 = vpop.permute.xlu0 %1421
    %1423 = vrot.lane.b32.xlu0 %v1386, 8
    %v1424 = vpop.permute.xlu0 %1423
    %1425 = vrot.lane.b32.xlu0 %v1389, 8
    %v1426 = vpop.permute.xlu0 %1425
    %1427 = vrot.lane.b32.xlu0 %v1392, 8
    %v1428 = vpop.permute.xlu0 %1427
    %1429 = vrot.lane.b32.xlu0 %v1395, 8
    %v1430 = vpop.permute.xlu0 %1429
    %1431 = vrot.lane.b32.xlu0 %v1398, 8
    %v1432 = vpop.permute.xlu0 %1431
    %1433 = vrot.lane.b32.xlu0 %v1401, 8
    %v1434 = vpop.permute.xlu0 %1433
    %1435 = vrot.lane.b32.xlu0 %v1404, 8
    %v1436 = vpop.permute.xlu0 %1435
    %1437 = vrot.lane.b32.xlu0 %v1407, 8
    %v1438 = vpop.permute.xlu0 %1437
    %1439 = vrot.lane.b32.xlu0 %v1410, 8
    %v1440 = vpop.permute.xlu0 %1439
    %v1456 = vrot.slane %v1309, 2
    %v1457 = vrot.slane %v1325, 2
    %v1458 = vsel %vm342, %v1456, %v1457
    %v1459 = vrot.slane %v1310, 2
    %v1460 = vrot.slane %v1326, 2
    %v1461 = vsel %vm342, %v1459, %v1460
    %v1462 = vrot.slane %v1311, 2
    %v1463 = vrot.slane %v1327, 2
    %v1464 = vsel %vm342, %v1462, %v1463
    %v1465 = vrot.slane %v1312, 2
    %v1466 = vrot.slane %v1328, 2
    %v1467 = vsel %vm342, %v1465, %v1466
    %v1468 = vrot.slane %v1313, 2
    %v1469 = vrot.slane %v1329, 2
    %v1470 = vsel %vm342, %v1468, %v1469
    %v1471 = vrot.slane %v1314, 2
    %v1472 = vrot.slane %v1330, 2
    %v1473 = vsel %vm342, %v1471, %v1472
    %v1474 = vrot.slane %v1315, 2
    %v1475 = vrot.slane %v1331, 2
    %v1476 = vsel %vm342, %v1474, %v1475
    %v1477 = vrot.slane %v1317, 2
    %v1478 = vrot.slane %v1333, 2
    %v1479 = vsel %vm342, %v1477, %v1478
    %v1480 = vrot.slane %v1318, 2
    %v1481 = vrot.slane %v1334, 2
    %v1482 = vsel %vm342, %v1480, %v1481
    %v1483 = vrot.slane %v1319, 2
    %v1484 = vrot.slane %v1335, 2
    %v1485 = vsel %vm342, %v1483, %v1484
    %v1486 = vrot.slane %v1320, 2
    %v1487 = vrot.slane %v1336, 2
    %v1488 = vsel %vm342, %v1486, %v1487
    %v1489 = vrot.slane %v1321, 2
    %v1490 = vrot.slane %v1337, 2
    %v1491 = vsel %vm342, %v1489, %v1490
    %v1492 = vrot.slane %v1322, 2
    %v1493 = vrot.slane %v1338, 2
    %v1494 = vsel %vm342, %v1492, %v1493
    %v1495 = vrot.slane %v1323, 2
    %v1496 = vrot.slane %v1339, 2
    %v1497 = vsel %vm342, %v1495, %v1496
    %1498 = vrot.lane.b32.xlu0 %v345, 16
    %v1499 = vpop.permute.xlu0 %1498
    %1500 = vrot.lane.b32.xlu0 %v1458, 16
    %v1501 = vpop.permute.xlu0 %1500
    %1502 = vrot.lane.b32.xlu0 %v1461, 16
    %v1503 = vpop.permute.xlu0 %1502
    %1504 = vrot.lane.b32.xlu0 %v1464, 16
    %v1505 = vpop.permute.xlu0 %1504
    %1506 = vrot.lane.b32.xlu0 %v1467, 16
    %v1507 = vpop.permute.xlu0 %1506
    %1508 = vrot.lane.b32.xlu0 %v1470, 16
    %v1509 = vpop.permute.xlu0 %1508
    %1510 = vrot.lane.b32.xlu0 %v1473, 16
    %v1511 = vpop.permute.xlu0 %1510
    %1512 = vrot.lane.b32.xlu0 %v1476, 16
    %v1513 = vpop.permute.xlu0 %1512
    %1514 = vrot.lane.b32.xlu0 %v1479, 16
    %v1515 = vpop.permute.xlu0 %1514
    %1516 = vrot.lane.b32.xlu0 %v1482, 16
    %v1517 = vpop.permute.xlu0 %1516
    %1518 = vrot.lane.b32.xlu0 %v1485, 16
    %v1519 = vpop.permute.xlu0 %1518
    %1520 = vrot.lane.b32.xlu0 %v1488, 16
    %v1521 = vpop.permute.xlu0 %1520
    %1522 = vrot.lane.b32.xlu0 %v1491, 16
    %v1523 = vpop.permute.xlu0 %1522
    %1524 = vrot.lane.b32.xlu0 %v1494, 16
    %v1525 = vpop.permute.xlu0 %1524
    %1526 = vrot.lane.b32.xlu0 %v1497, 16
    %v1527 = vpop.permute.xlu0 %1526
    %1545 = vrot.lane.b32.xlu0 %v1309, 24
    %v1546 = vpop.permute.xlu0 %1545
    %1547 = vrot.lane.b32.xlu0 %v1310, 24
    %v1548 = vpop.permute.xlu0 %1547
    %1549 = vrot.lane.b32.xlu0 %v1311, 24
    %v1550 = vpop.permute.xlu0 %1549
    %1551 = vrot.lane.b32.xlu0 %v1312, 24
    %v1552 = vpop.permute.xlu0 %1551
    %1553 = vrot.lane.b32.xlu0 %v1313, 24
    %v1554 = vpop.permute.xlu0 %1553
    %1555 = vrot.lane.b32.xlu0 %v1314, 24
    %v1556 = vpop.permute.xlu0 %1555
    %1557 = vrot.lane.b32.xlu0 %v1315, 24
    %v1558 = vpop.permute.xlu0 %1557
    %1559 = vrot.lane.b32.xlu0 %v1316, 24
    %v1560 = vpop.permute.xlu0 %1559
    %1561 = vrot.lane.b32.xlu0 %v1317, 24
    %v1562 = vpop.permute.xlu0 %1561
    %1563 = vrot.lane.b32.xlu0 %v1318, 24
    %v1564 = vpop.permute.xlu0 %1563
    %1565 = vrot.lane.b32.xlu0 %v1319, 24
    %v1566 = vpop.permute.xlu0 %1565
    %1567 = vrot.lane.b32.xlu0 %v1320, 24
    %v1568 = vpop.permute.xlu0 %1567
    %1569 = vrot.lane.b32.xlu0 %v1321, 24
    %v1570 = vpop.permute.xlu0 %1569
    %1571 = vrot.lane.b32.xlu0 %v1322, 24
    %v1572 = vpop.permute.xlu0 %1571
    %1573 = vrot.lane.b32.xlu0 %v1323, 24
    %v1574 = vpop.permute.xlu0 %1573
    %1575 = vrot.lane.b32.xlu0 %v1324, 24
    %v1576 = vpop.permute.xlu0 %1575
    %v1595 = vrot.slane %v1316, 1
    %v1596 = vrot.slane %v1332, 1
    %v1597 = vsel %vm251, %v1595, %v1596
    %v1598 = vrot.slane %v1324, 1
    %v1599 = vrot.slane %v1340, 1
    %v1600 = vsel %vm251, %v1598, %v1599
    %1601 = vrot.lane.b32.xlu0 %v1371, 32
    %v1602 = vpop.permute.xlu0 %1601
    %1603 = vrot.lane.b32.xlu0 %v1374, 32
    %v1604 = vpop.permute.xlu0 %1603
    %1605 = vrot.lane.b32.xlu0 %v1377, 32
    %v1606 = vpop.permute.xlu0 %1605
    %1607 = vrot.lane.b32.xlu0 %v1380, 32
    %v1608 = vpop.permute.xlu0 %1607
    %1609 = vrot.lane.b32.xlu0 %v1383, 32
    %v1610 = vpop.permute.xlu0 %1609
    %1611 = vrot.lane.b32.xlu0 %v1386, 32
    %v1612 = vpop.permute.xlu0 %1611
    %1613 = vrot.lane.b32.xlu0 %v1389, 32
    %v1614 = vpop.permute.xlu0 %1613
    %1615 = vrot.lane.b32.xlu0 %v1597, 32
    %v1616 = vpop.permute.xlu0 %1615
    %1617 = vrot.lane.b32.xlu0 %v1392, 32
    %v1618 = vpop.permute.xlu0 %1617
    %1619 = vrot.lane.b32.xlu0 %v1395, 32
    %v1620 = vpop.permute.xlu0 %1619
    %1621 = vrot.lane.b32.xlu0 %v1398, 32
    %v1622 = vpop.permute.xlu0 %1621
    %1623 = vrot.lane.b32.xlu0 %v1401, 32
    %v1624 = vpop.permute.xlu0 %1623
    %1625 = vrot.lane.b32.xlu0 %v1404, 32
    %v1626 = vpop.permute.xlu0 %1625
    %1627 = vrot.lane.b32.xlu0 %v1407, 32
    %v1628 = vpop.permute.xlu0 %1627
    %1629 = vrot.lane.b32.xlu0 %v1410, 32
    %v1630 = vpop.permute.xlu0 %1629
    %1631 = vrot.lane.b32.xlu0 %v1600, 32
    %v1632 = vpop.permute.xlu0 %1631
    %v1649 = vrot.slane %v1316, 2
    %v1650 = vrot.slane %v1332, 2
    %v1651 = vsel %vm342, %v1649, %v1650
    %v1652 = vrot.slane %v1324, 2
    %v1653 = vrot.slane %v1340, 2
    %v1654 = vsel %vm342, %v1652, %v1653
    %1655 = vrot.lane.b32.xlu0 %v1458, 40
    %v1656 = vpop.permute.xlu0 %1655
    %1657 = vrot.lane.b32.xlu0 %v1461, 40
    %v1658 = vpop.permute.xlu0 %1657
    %1659 = vrot.lane.b32.xlu0 %v1464, 40
    %v1660 = vpop.permute.xlu0 %1659
    %1661 = vrot.lane.b32.xlu0 %v1467, 40
    %v1662 = vpop.permute.xlu0 %1661
    %1663 = vrot.lane.b32.xlu0 %v1470, 40
    %v1664 = vpop.permute.xlu0 %1663
    %1665 = vrot.lane.b32.xlu0 %v1473, 40
    %v1666 = vpop.permute.xlu0 %1665
    %1667 = vrot.lane.b32.xlu0 %v1476, 40
    %v1668 = vpop.permute.xlu0 %1667
    %1669 = vrot.lane.b32.xlu0 %v1651, 40
    %v1670 = vpop.permute.xlu0 %1669
    %1671 = vrot.lane.b32.xlu0 %v1479, 40
    %v1672 = vpop.permute.xlu0 %1671
    %1673 = vrot.lane.b32.xlu0 %v1482, 40
    %v1674 = vpop.permute.xlu0 %1673
    %1675 = vrot.lane.b32.xlu0 %v1485, 40
    %v1676 = vpop.permute.xlu0 %1675
    %1677 = vrot.lane.b32.xlu0 %v1488, 40
    %v1678 = vpop.permute.xlu0 %1677
    %1679 = vrot.lane.b32.xlu0 %v1491, 40
    %v1680 = vpop.permute.xlu0 %1679
    %1681 = vrot.lane.b32.xlu0 %v1494, 40
    %v1682 = vpop.permute.xlu0 %1681
    %1683 = vrot.lane.b32.xlu0 %v1497, 40
    %v1684 = vpop.permute.xlu0 %1683
    %1685 = vrot.lane.b32.xlu0 %v1654, 40
    %v1686 = vpop.permute.xlu0 %1685
    %1703 = vrot.lane.b32.xlu0 %v1310, 48
    %v1704 = vpop.permute.xlu0 %1703
    %1705 = vrot.lane.b32.xlu0 %v1311, 48
    %v1706 = vpop.permute.xlu0 %1705
    %1707 = vrot.lane.b32.xlu0 %v1312, 48
    %v1708 = vpop.permute.xlu0 %1707
    %1709 = vrot.lane.b32.xlu0 %v1313, 48
    %v1710 = vpop.permute.xlu0 %1709
    %1711 = vrot.lane.b32.xlu0 %v1314, 48
    %v1712 = vpop.permute.xlu0 %1711
    %1713 = vrot.lane.b32.xlu0 %v1315, 48
    %v1714 = vpop.permute.xlu0 %1713
    %1715 = vrot.lane.b32.xlu0 %v1316, 48
    %v1716 = vpop.permute.xlu0 %1715
    %1717 = vrot.lane.b32.xlu0 %v187, 48
    %v1718 = vpop.permute.xlu0 %1717
    %1719 = vrot.lane.b32.xlu0 %v1318, 48
    %v1720 = vpop.permute.xlu0 %1719
    %1721 = vrot.lane.b32.xlu0 %v1319, 48
    %v1722 = vpop.permute.xlu0 %1721
    %1723 = vrot.lane.b32.xlu0 %v1320, 48
    %v1724 = vpop.permute.xlu0 %1723
    %1725 = vrot.lane.b32.xlu0 %v1321, 48
    %v1726 = vpop.permute.xlu0 %1725
    %1727 = vrot.lane.b32.xlu0 %v1322, 48
    %v1728 = vpop.permute.xlu0 %1727
    %1729 = vrot.lane.b32.xlu0 %v1323, 48
    %v1730 = vpop.permute.xlu0 %1729
    %1731 = vrot.lane.b32.xlu0 %v1324, 48
    %v1732 = vpop.permute.xlu0 %1731
    %1748 = vrot.lane.b32.xlu0 %v1374, 56
    %v1749 = vpop.permute.xlu0 %1748
    %1750 = vrot.lane.b32.xlu0 %v1377, 56
    %v1751 = vpop.permute.xlu0 %1750
    %1752 = vrot.lane.b32.xlu0 %v1380, 56
    %v1753 = vpop.permute.xlu0 %1752
    %1754 = vrot.lane.b32.xlu0 %v1383, 56
    %v1755 = vpop.permute.xlu0 %1754
    %1756 = vrot.lane.b32.xlu0 %v1386, 56
    %v1757 = vpop.permute.xlu0 %1756
    %1758 = vrot.lane.b32.xlu0 %v1389, 56
    %v1759 = vpop.permute.xlu0 %1758
    %1760 = vrot.lane.b32.xlu0 %v1597, 56
    %v1761 = vpop.permute.xlu0 %1760
    %1762 = vrot.lane.b32.xlu0 %v254, 56
    %v1763 = vpop.permute.xlu0 %1762
    %1764 = vrot.lane.b32.xlu0 %v1395, 56
    %v1765 = vpop.permute.xlu0 %1764
    %1766 = vrot.lane.b32.xlu0 %v1398, 56
    %v1767 = vpop.permute.xlu0 %1766
    %1768 = vrot.lane.b32.xlu0 %v1401, 56
    %v1769 = vpop.permute.xlu0 %1768
    %1770 = vrot.lane.b32.xlu0 %v1404, 56
    %v1771 = vpop.permute.xlu0 %1770
    %1772 = vrot.lane.b32.xlu0 %v1407, 56
    %v1773 = vpop.permute.xlu0 %1772
    %1774 = vrot.lane.b32.xlu0 %v1410, 56
    %v1775 = vpop.permute.xlu0 %1774
    %1776 = vrot.lane.b32.xlu0 %v1600, 56
    %v1777 = vpop.permute.xlu0 %1776
    %1793 = vrot.lane.b32.xlu0 %v1461, 64
    %v1794 = vpop.permute.xlu0 %1793
    %1795 = vrot.lane.b32.xlu0 %v1464, 64
    %v1796 = vpop.permute.xlu0 %1795
    %1797 = vrot.lane.b32.xlu0 %v1467, 64
    %v1798 = vpop.permute.xlu0 %1797
    %1799 = vrot.lane.b32.xlu0 %v1470, 64
    %v1800 = vpop.permute.xlu0 %1799
    %1801 = vrot.lane.b32.xlu0 %v1473, 64
    %v1802 = vpop.permute.xlu0 %1801
    %1803 = vrot.lane.b32.xlu0 %v1476, 64
    %v1804 = vpop.permute.xlu0 %1803
    %1805 = vrot.lane.b32.xlu0 %v1651, 64
    %v1806 = vpop.permute.xlu0 %1805
    %1807 = vrot.lane.b32.xlu0 %v345, 64
    %v1808 = vpop.permute.xlu0 %1807
    %1809 = vrot.lane.b32.xlu0 %v1482, 64
    %v1810 = vpop.permute.xlu0 %1809
    %1811 = vrot.lane.b32.xlu0 %v1485, 64
    %v1812 = vpop.permute.xlu0 %1811
    %1813 = vrot.lane.b32.xlu0 %v1488, 64
    %v1814 = vpop.permute.xlu0 %1813
    %1815 = vrot.lane.b32.xlu0 %v1491, 64
    %v1816 = vpop.permute.xlu0 %1815
    %1817 = vrot.lane.b32.xlu0 %v1494, 64
    %v1818 = vpop.permute.xlu0 %1817
    %1819 = vrot.lane.b32.xlu0 %v1497, 64
    %v1820 = vpop.permute.xlu0 %1819
    %1821 = vrot.lane.b32.xlu0 %v1654, 64
    %v1822 = vpop.permute.xlu0 %1821
    %v1838 = vsel %vm744, %v187, %v1412
    %v1839 = vsel %vm744, %v1309, %v1414
    %v1840 = vsel %vm744, %v1310, %v1416
    %v1841 = vsel %vm744, %v1311, %v1418
    %v1842 = vsel %vm744, %v1312, %v1420
    %v1843 = vsel %vm744, %v1313, %v1422
    %v1844 = vsel %vm744, %v1314, %v1424
    %v1845 = vsel %vm744, %v1315, %v1426
    %v1846 = vsel %vm744, %v1317, %v1428
    %v1847 = vsel %vm744, %v1318, %v1430
    %v1848 = vsel %vm744, %v1319, %v1432
    %v1849 = vsel %vm744, %v1320, %v1434
    %v1850 = vsel %vm744, %v1321, %v1436
    %v1851 = vsel %vm744, %v1322, %v1438
    %v1852 = vsel %vm744, %v1323, %v1440
    %v1853 = vsel %vm777, %v1838, %v1499
    %v1854 = vsel %vm777, %v1839, %v1501
    %v1855 = vsel %vm777, %v1840, %v1503
    %v1856 = vsel %vm777, %v1841, %v1505
    %v1857 = vsel %vm777, %v1842, %v1507
    %v1858 = vsel %vm777, %v1843, %v1509
    %v1859 = vsel %vm777, %v1844, %v1511
    %v1860 = vsel %vm777, %v1845, %v1513
    %v1861 = vsel %vm777, %v1846, %v1515
    %v1862 = vsel %vm777, %v1847, %v1517
    %v1863 = vsel %vm777, %v1848, %v1519
    %v1864 = vsel %vm777, %v1849, %v1521
    %v1865 = vsel %vm777, %v1850, %v1523
    %v1866 = vsel %vm777, %v1851, %v1525
    %v1867 = vsel %vm777, %v1852, %v1527
    %v1868 = vsel %vm811, %v1853, %v1546
    %v1869 = vsel %vm811, %v1854, %v1548
    %v1870 = vsel %vm811, %v1855, %v1550
    %v1871 = vsel %vm811, %v1856, %v1552
    %v1872 = vsel %vm811, %v1857, %v1554
    %v1873 = vsel %vm811, %v1858, %v1556
    %v1874 = vsel %vm811, %v1859, %v1558
    %v1875 = vsel %vm811, %v1860, %v1560
    %v1876 = vsel %vm811, %v1853, %v1562
    %v1877 = vsel %vm811, %v1861, %v1564
    %v1878 = vsel %vm811, %v1862, %v1566
    %v1879 = vsel %vm811, %v1863, %v1568
    %v1880 = vsel %vm811, %v1864, %v1570
    %v1881 = vsel %vm811, %v1865, %v1572
    %v1882 = vsel %vm811, %v1866, %v1574
    %v1883 = vsel %vm811, %v1867, %v1576
    %v1884 = vsel %vm845, %v1868, %v1602
    %v1885 = vsel %vm845, %v1869, %v1604
    %v1886 = vsel %vm845, %v1870, %v1606
    %v1887 = vsel %vm845, %v1871, %v1608
    %v1888 = vsel %vm845, %v1872, %v1610
    %v1889 = vsel %vm845, %v1873, %v1612
    %v1890 = vsel %vm845, %v1874, %v1614
    %v1891 = vsel %vm845, %v1875, %v1616
    %v1892 = vsel %vm845, %v1876, %v1618
    %v1893 = vsel %vm845, %v1877, %v1620
    %v1894 = vsel %vm845, %v1878, %v1622
    %v1895 = vsel %vm845, %v1879, %v1624
    %v1896 = vsel %vm845, %v1880, %v1626
    %v1897 = vsel %vm845, %v1881, %v1628
    %v1898 = vsel %vm845, %v1882, %v1630
    %v1899 = vsel %vm845, %v1883, %v1632
    %vm1900 = vcmask 326656
    %v1901 = vsel %vm1900, %v1884, %v1656
    %v1902 = vsel %vm1900, %v1885, %v1658
    %v1903 = vsel %vm1900, %v1886, %v1660
    %v1904 = vsel %vm1900, %v1887, %v1662
    %v1905 = vsel %vm1900, %v1888, %v1664
    %v1906 = vsel %vm1900, %v1889, %v1666
    %v1907 = vsel %vm1900, %v1890, %v1668
    %v1908 = vsel %vm1900, %v1891, %v1670
    %v1909 = vsel %vm1900, %v1892, %v1672
    %v1910 = vsel %vm1900, %v1893, %v1674
    %v1911 = vsel %vm1900, %v1894, %v1676
    %v1912 = vsel %vm1900, %v1895, %v1678
    %v1913 = vsel %vm1900, %v1896, %v1680
    %v1914 = vsel %vm1900, %v1897, %v1682
    %v1915 = vsel %vm1900, %v1898, %v1684
    %v1916 = vsel %vm1900, %v1899, %v1686
    %vm1917 = vcmask 392192
    %v1918 = vsel %vm1917, %v1901, %v1704
    %v1919 = vsel %vm1917, %v1902, %v1706
    %v1920 = vsel %vm1917, %v1903, %v1708
    %v1921 = vsel %vm1917, %v1904, %v1710
    %v1922 = vsel %vm1917, %v1905, %v1712
    %v1923 = vsel %vm1917, %v1906, %v1714
    %v1924 = vsel %vm1917, %v1907, %v1716
    %v1925 = vsel %vm1917, %v1908, %v1718
    %v1926 = vsel %vm1917, %v1909, %v1720
    %v1927 = vsel %vm1917, %v1910, %v1722
    %v1928 = vsel %vm1917, %v1911, %v1724
    %v1929 = vsel %vm1917, %v1912, %v1726
    %v1930 = vsel %vm1917, %v1913, %v1728
    %v1931 = vsel %vm1917, %v1914, %v1730
    %v1932 = vsel %vm1917, %v1915, %v1732
    %v1933 = vsel %vm1917, %v1916, %v1718
    %vm1934 = vcmask 457728
    %v1935 = vsel %vm1934, %v1918, %v1749
    %v1936 = vsel %vm1934, %v1919, %v1751
    %v1937 = vsel %vm1934, %v1920, %v1753
    %v1938 = vsel %vm1934, %v1921, %v1755
    %v1939 = vsel %vm1934, %v1922, %v1757
    %v1940 = vsel %vm1934, %v1923, %v1759
    %v1941 = vsel %vm1934, %v1924, %v1761
    %v1942 = vsel %vm1934, %v1925, %v1763
    %v1943 = vsel %vm1934, %v1926, %v1765
    %v1944 = vsel %vm1934, %v1927, %v1767
    %v1945 = vsel %vm1934, %v1928, %v1769
    %v1946 = vsel %vm1934, %v1929, %v1771
    %v1947 = vsel %vm1934, %v1930, %v1773
    %v1948 = vsel %vm1934, %v1931, %v1775
    %v1949 = vsel %vm1934, %v1932, %v1777
    %v1950 = vsel %vm1934, %v1933, %v1763
    %vm1951 = vcmask 523264
    %v1952 = vsel %vm1951, %v1935, %v1794
    %v1953 = vsel %vm1951, %v1936, %v1796
    %v1954 = vsel %vm1951, %v1937, %v1798
    %v1955 = vsel %vm1951, %v1938, %v1800
    %v1956 = vsel %vm1951, %v1939, %v1802
    %v1957 = vsel %vm1951, %v1940, %v1804
    %v1958 = vsel %vm1951, %v1941, %v1806
    %v1959 = vsel %vm1951, %v1942, %v1808
    %v1960 = vsel %vm1951, %v1943, %v1810
    %v1961 = vsel %vm1951, %v1944, %v1812
    %v1962 = vsel %vm1951, %v1945, %v1814
    %v1963 = vsel %vm1951, %v1946, %v1816
    %v1964 = vsel %vm1951, %v1947, %v1818
    %v1965 = vsel %vm1951, %v1948, %v1820
    %v1966 = vsel %vm1951, %v1949, %v1822
    %v1967 = vsel %vm1951, %v1950, %v1808
    %v1968 = vld [vmem:[%s3] sm:$0xff]
    %v1969 = vld [vmem:[%s3 + $0x8] sm:$0xff]
    %v1970 = vld [vmem:[%s3 + $0x10] sm:$0xff]
    %v1971 = vld [vmem:[%s3 + $0x18] sm:$0xff]
    %v1972 = vld [vmem:[%s3 + $0x20] sm:$0xff]
    %v1973 = vld [vmem:[%s3 + $0x28] sm:$0xff]
    %v1974 = vld [vmem:[%s3 + $0x30] sm:$0xff]
    %v1975 = vld [vmem:[%s3 + $0x38] sm:$0xff]
    %v1976 = vld [vmem:[%s3 + $0x40] sm:$0xff]
    %vm1977 = vcmask 588800
    %v1979 = vsel %vm1977, %v1952, 0
    %v1982 = vsel %vm1977, %v1953, 0
    %v1985 = vsel %vm1977, %v1954, 0
    %v1988 = vsel %vm1977, %v1955, 0
    %v1991 = vsel %vm1977, %v1956, 0
    %v1994 = vsel %vm1977, %v1957, 0
    %v1997 = vsel %vm1977, %v1958, 0
    %v2000 = vsel %vm1977, %v1959, 0
    %v2003 = vsel %vm1977, %v1960, 0
    %v2006 = vsel %vm1977, %v1961, 0
    %v2009 = vsel %vm1977, %v1962, 0
    %v2012 = vsel %vm1977, %v1963, 0
    %v2015 = vsel %vm1977, %v1964, 0
    %v2018 = vsel %vm1977, %v1965, 0
    %v2021 = vsel %vm1977, %v1966, 0
    %v2024 = vsel %vm1977, %v1967, 0
    %2026 = vmatprep.subr.mxu0 0.0
    %2027 = vmatpush1.msra.mxu0 0.0
    %2028 = vmatprep.subr.mxu0 0.0
    %2029 = vmatpush1.msra.mxu0 0.0
    %2030 = vmatprep.subr.mxu0 0.0
    %2031 = vmatpush1.msra.mxu0 0.0
    %2032 = vmatprep.subr.mxu0 0.0
    %2033 = vmatpush1.msra.mxu0 0.0
    %2034 = vmatprep.subr.mxu0 0.0
    %2035 = vmatpush1.msra.mxu0 0.0
    %2036 = vmatprep.subr.mxu0 0.0
    %2037 = vmatpush1.msra.mxu0 0.0
    %2038 = vmatprep.subr.mxu0 0.0
    %2039 = vmatpush1.msra.mxu0 0.0
    %2040 = vmatprep.subr.mxu0 0.0
    %2041 = vmatpush1.msra.mxu0 %v1976
    %2042 = vmatprep.subr.mxu0 0.0
    %2043 = vmatpush1.msra.mxu0 %v1975
    %2044 = vmatprep.subr.mxu0 0.0
    %2045 = vmatpush1.msra.mxu0 %v1974
    %2046 = vmatprep.subr.mxu0 0.0
    %2047 = vmatpush1.msra.mxu0 %v1973
    %2048 = vmatprep.subr.mxu0 0.0
    %2049 = vmatpush1.msra.mxu0 %v1972
    %2050 = vmatprep.subr.mxu0 0.0
    %2051 = vmatpush1.msra.mxu0 %v1971
    %2052 = vmatprep.subr.mxu0 0.0
    %2053 = vmatpush1.msra.mxu0 %v1970
    %2054 = vmatprep.subr.mxu0 0.0
    %2055 = vmatpush1.msra.mxu0 %v1969
    %2056 = vmatprep.subr.mxu0 0.0
    %2057 = vmatpush1.msra.mxu0 %v1968
    %2058 = vmatprep.subr.mxu0 0.0
    %2059 = vmatpush2.msra.mxu0 0.0
    %2060 = vmatprep.subr.mxu0 0.0
    %2061 = vmatpush2.msra.mxu0 0.0
    %2062 = vmatprep.subr.mxu0 0.0
    %2063 = vmatpush2.msra.mxu0 0.0
    %2064 = vmatprep.subr.mxu0 0.0
    %2065 = vmatpush2.msra.mxu0 0.0
    %2066 = vmatprep.subr.mxu0 0.0
    %2067 = vmatpush2.msra.mxu0 0.0
    %2068 = vmatprep.subr.mxu0 0.0
    %2069 = vmatpush2.msra.mxu0 0.0
    %2070 = vmatprep.subr.mxu0 0.0
    %2071 = vmatpush2.msra.mxu0 0.0
    %2072 = vmatprep.subr.mxu0 0.0
    %2073 = vmatpush2.msra.mxu0 0.0
    %2074 = vmatprep.subr.mxu0 0.0
    %2075 = vmatpush2.msra.mxu0 0.0
    %2076 = vmatprep.subr.mxu0 0.0
    %2077 = vmatpush2.msra.mxu0 0.0
    %2078 = vmatprep.subr.mxu0 0.0
    %2079 = vmatpush2.msra.mxu0 0.0
    %2080 = vmatprep.subr.mxu0 0.0
    %2081 = vmatpush2.msra.mxu0 0.0
    %2082 = vmatprep.subr.mxu0 0.0
    %2083 = vmatpush2.msra.mxu0 0.0
    %2084 = vmatprep.subr.mxu0 0.0
    %2085 = vmatpush2.msra.mxu0 0.0
    %2086 = vmatprep.subr.mxu0 0.0
    %2087 = vmatpush2.msra.mxu0 0.0
    %2088 = vmatprep.subr.mxu0 0.0
    %2089 = vmatpush2.msra.mxu0 0.0
    %2090 = vmatprep.mubr.f32.mxu0 0.0
    %2091 = vmatmul.mubr.f32.gmra.mxu0 %v1979
    %v2092 = vpop.f32.mrf.mxu0
    %v2093 = vadd.f32 0.0, %v2092
    %v2094 = vpop.f32.mrf.mxu0
    %2095 = vmatprep.mubr.f32.mxu0 0.0
    %2096 = vmatmul.mubr.f32.gmra.mxu0 %v1982
    %v2097 = vpop.f32.mrf.mxu0
    %v2098 = vadd.f32 0.0, %v2097
    %v2099 = vpop.f32.mrf.mxu0
    %2100 = vmatprep.mubr.f32.mxu0 0.0
    %2101 = vmatmul.mubr.f32.gmra.mxu0 %v1985
    %v2102 = vpop.f32.mrf.mxu0
    %v2103 = vadd.f32 0.0, %v2102
    %v2104 = vpop.f32.mrf.mxu0
    %2105 = vmatprep.mubr.f32.mxu0 0.0
    %2106 = vmatmul.mubr.f32.gmra.mxu0 %v1988
    %v2107 = vpop.f32.mrf.mxu0
    %v2108 = vadd.f32 0.0, %v2107
    %v2109 = vpop.f32.mrf.mxu0
    %2110 = vmatprep.mubr.f32.mxu0 0.0
    %2111 = vmatmul.mubr.f32.gmra.mxu0 %v1991
    %v2112 = vpop.f32.mrf.mxu0
    %v2113 = vadd.f32 0.0, %v2112
    %v2114 = vpop.f32.mrf.mxu0
    %2115 = vmatprep.mubr.f32.mxu0 0.0
    %2116 = vmatmul.mubr.f32.gmra.mxu0 %v1994
    %v2117 = vpop.f32.mrf.mxu0
    %v2118 = vadd.f32 0.0, %v2117
    %v2119 = vpop.f32.mrf.mxu0
    %2120 = vmatprep.mubr.f32.mxu0 0.0
    %2121 = vmatmul.mubr.f32.gmra.mxu0 %v1997
    %v2122 = vpop.f32.mrf.mxu0
    %v2123 = vadd.f32 0.0, %v2122
    %v2124 = vpop.f32.mrf.mxu0
    %2125 = vmatprep.mubr.f32.mxu0 0.0
    %2126 = vmatmul.mubr.f32.gmra.mxu0 %v2000
    %v2127 = vpop.f32.mrf.mxu0
    %v2128 = vadd.f32 0.0, %v2127
    %v2129 = vpop.f32.mrf.mxu0
    %2130 = vmatprep.mubr.f32.mxu0 0.0
    %2131 = vmatmul.mubr.f32.gmra.mxu0 %v2003
    %v2132 = vpop.f32.mrf.mxu0
    %v2133 = vadd.f32 0.0, %v2132
    %v2134 = vpop.f32.mrf.mxu0
    %2135 = vmatprep.mubr.f32.mxu0 0.0
    %2136 = vmatmul.mubr.f32.gmra.mxu0 %v2006
    %v2137 = vpop.f32.mrf.mxu0
    %v2138 = vadd.f32 0.0, %v2137
    %v2139 = vpop.f32.mrf.mxu0
    %2140 = vmatprep.mubr.f32.mxu0 0.0
    %2141 = vmatmul.mubr.f32.gmra.mxu0 %v2009
    %v2142 = vpop.f32.mrf.mxu0
    %v2143 = vadd.f32 0.0, %v2142
    %v2144 = vpop.f32.mrf.mxu0
    %2145 = vmatprep.mubr.f32.mxu0 0.0
    %2146 = vmatmul.mubr.f32.gmra.mxu0 %v2012
    %v2147 = vpop.f32.mrf.mxu0
    %v2148 = vadd.f32 0.0, %v2147
    %v2149 = vpop.f32.mrf.mxu0
    %2150 = vmatprep.mubr.f32.mxu0 0.0
    %2151 = vmatmul.mubr.f32.gmra.mxu0 %v2015
    %v2152 = vpop.f32.mrf.mxu0
    %v2153 = vadd.f32 0.0, %v2152
    %v2154 = vpop.f32.mrf.mxu0
    %2155 = vmatprep.mubr.f32.mxu0 0.0
    %2156 = vmatmul.mubr.f32.gmra.mxu0 %v2018
    %v2157 = vpop.f32.mrf.mxu0
    %v2158 = vadd.f32 0.0, %v2157
    %v2159 = vpop.f32.mrf.mxu0
    %2160 = vmatprep.mubr.f32.mxu0 0.0
    %2161 = vmatmul.mubr.f32.gmra.mxu0 %v2021
    %v2162 = vpop.f32.mrf.mxu0
    %v2163 = vadd.f32 0.0, %v2162
    %v2164 = vpop.f32.mrf.mxu0
    %2165 = vmatprep.mubr.f32.mxu0 0.0
    %2166 = vmatmul.mubr.f32.gmra.mxu0 %v2024
    %v2167 = vpop.f32.mrf.mxu0
    %v2168 = vadd.f32 0.0, %v2167
    %v2169 = vpop.f32.mrf.mxu0
    %2170 = vdwg.mxu0
    %s2171 = sld [smem:[#allocation3]]
    %v2172 = vsel %vm744, %v2093, 0.0
    %v2173 = vsel %vm744, %v2098, 0.0
    %v2174 = vadd.f32 %v2172, %v2173
    %v2175 = vsel %vm744, %v2103, 0.0
    %v2176 = vadd.f32 %v2174, %v2175
    %v2177 = vsel %vm744, %v2108, 0.0
    %v2178 = vadd.f32 %v2176, %v2177
    %v2179 = vsel %vm744, %v2113, 0.0
    %v2180 = vadd.f32 %v2178, %v2179
    %v2181 = vsel %vm744, %v2118, 0.0
    %v2182 = vadd.f32 %v2180, %v2181
    %v2183 = vsel %vm744, %v2123, 0.0
    %v2184 = vadd.f32 %v2182, %v2183
    %v2185 = vsel %vm744, %v2128, 0.0
    %v2186 = vadd.f32 %v2184, %v2185
    %v2187 = vrot.slane %v2186, 4
    %v2188 = vadd.f32 %v2186, %v2187
    %v2189 = vrot.slane %v2188, 2
    %v2190 = vadd.f32 %v2188, %v2189
    %v2191 = vrot.slane %v2190, 1
    %v2192 = vadd.f32 %v2190, %v2191
    %v2193 = vsel %vm744, %v2133, 0.0
    %v2194 = vsel %vm744, %v2138, 0.0
    %v2195 = vadd.f32 %v2193, %v2194
    %v2196 = vsel %vm744, %v2143, 0.0
    %v2197 = vadd.f32 %v2195, %v2196
    %v2198 = vsel %vm744, %v2148, 0.0
    %v2199 = vadd.f32 %v2197, %v2198
    %v2200 = vsel %vm744, %v2153, 0.0
    %v2201 = vadd.f32 %v2199, %v2200
    %v2202 = vsel %vm744, %v2158, 0.0
    %v2203 = vadd.f32 %v2201, %v2202
    %v2204 = vsel %vm744, %v2163, 0.0
    %v2205 = vadd.f32 %v2203, %v2204
    %v2206 = vsel %vm744, %v2168, 0.0
    %v2207 = vadd.f32 %v2205, %v2206
    %v2208 = vrot.slane %v2207, 4
    %v2209 = vadd.f32 %v2207, %v2208
    %v2210 = vrot.slane %v2209, 2
    %v2211 = vadd.f32 %v2209, %v2210
    %v2212 = vrot.slane %v2211, 1
    %v2213 = vadd.f32 %v2211, %v2212
    %v2214 = vmul.f32 %v2093, %v2093
    %v2215 = vmul.f32 %v2098, %v2098
    %v2216 = vmul.f32 %v2103, %v2103
    %v2217 = vmul.f32 %v2108, %v2108
    %v2218 = vmul.f32 %v2113, %v2113
    %v2219 = vmul.f32 %v2118, %v2118
    %v2220 = vmul.f32 %v2123, %v2123
    %v2221 = vmul.f32 %v2128, %v2128
    %v2222 = vmul.f32 %v2133, %v2133
    %v2223 = vmul.f32 %v2138, %v2138
    %v2224 = vmul.f32 %v2143, %v2143
    %v2225 = vmul.f32 %v2148, %v2148
    %v2226 = vmul.f32 %v2153, %v2153
    %v2227 = vmul.f32 %v2158, %v2158
    %v2228 = vmul.f32 %v2163, %v2163
    %v2229 = vmul.f32 %v2168, %v2168
    %v2230 = vsel %vm744, %v2214, 0.0
    %v2231 = vsel %vm744, %v2215, 0.0
    %v2232 = vadd.f32 %v2230, %v2231
    %v2233 = vsel %vm744, %v2216, 0.0
    %v2234 = vadd.f32 %v2232, %v2233
    %v2235 = vsel %vm744, %v2217, 0.0
    %v2236 = vadd.f32 %v2234, %v2235
    %v2237 = vsel %vm744, %v2218, 0.0
    %v2238 = vadd.f32 %v2236, %v2237
    %v2239 = vsel %vm744, %v2219, 0.0
    %v2240 = vadd.f32 %v2238, %v2239
    %v2241 = vsel %vm744, %v2220, 0.0
    %v2242 = vadd.f32 %v2240, %v2241
    %v2243 = vsel %vm744, %v2221, 0.0
    %v2244 = vadd.f32 %v2242, %v2243
    %v2245 = vrot.slane %v2244, 4
    %v2246 = vadd.f32 %v2244, %v2245
    %v2247 = vrot.slane %v2246, 2
    %v2248 = vadd.f32 %v2246, %v2247
    %v2249 = vrot.slane %v2248, 1
    %v2250 = vadd.f32 %v2248, %v2249
    %v2251 = vsel %vm744, %v2222, 0.0
    %v2252 = vsel %vm744, %v2223, 0.0
    %v2253 = vadd.f32 %v2251, %v2252
    %v2254 = vsel %vm744, %v2224, 0.0
    %v2255 = vadd.f32 %v2253, %v2254
    %v2256 = vsel %vm744, %v2225, 0.0
    %v2257 = vadd.f32 %v2255, %v2256
    %v2258 = vsel %vm744, %v2226, 0.0
    %v2259 = vadd.f32 %v2257, %v2258
    %v2260 = vsel %vm744, %v2227, 0.0
    %v2261 = vadd.f32 %v2259, %v2260
    %v2262 = vsel %vm744, %v2228, 0.0
    %v2263 = vadd.f32 %v2261, %v2262
    %v2264 = vsel %vm744, %v2229, 0.0
    %v2265 = vadd.f32 %v2263, %v2264
    %v2266 = vrot.slane %v2265, 4
    %v2267 = vadd.f32 %v2265, %v2266
    %v2268 = vrot.slane %v2267, 2
    %v2269 = vadd.f32 %v2267, %v2268
    %v2270 = vrot.slane %v2269, 1
    %v2271 = vadd.f32 %v2269, %v2270
    %v2272 = vmul.f32 %v2192, 0.015625
    %v2273 = vmul.f32 %v2213, 0.015625
    %v2274 = vmul.f32 %v2250, 0.015625
    %v2275 = vmul.f32 %v2271, 0.015625
    %v2276 = vmul.f32 %v2272, %v2272
    %v2277 = vmul.f32 %v2273, %v2273
    %v2278 = vsub.f32 %v2274, %v2276
    %v2279 = vsub.f32 %v2275, %v2277
    %v2280 = vmax.f32 %v2278, 0.0
    %v2281 = vmax.f32 %v2279, 0.0
    %v2282 = vsub.f32 %v2093, %v2272
    %v2283 = vsub.f32 %v2098, %v2272
    %v2284 = vsub.f32 %v2103, %v2272
    %v2285 = vsub.f32 %v2108, %v2272
    %v2286 = vsub.f32 %v2113, %v2272
    %v2287 = vsub.f32 %v2118, %v2272
    %v2288 = vsub.f32 %v2123, %v2272
    %v2289 = vsub.f32 %v2128, %v2272
    %v2290 = vsub.f32 %v2133, %v2273
    %v2291 = vsub.f32 %v2138, %v2273
    %v2292 = vsub.f32 %v2143, %v2273
    %v2293 = vsub.f32 %v2148, %v2273
    %v2294 = vsub.f32 %v2153, %v2273
    %v2295 = vsub.f32 %v2158, %v2273
    %v2296 = vsub.f32 %v2163, %v2273
    %v2297 = vsub.f32 %v2168, %v2273
    %v2298 = vadd.f32 %v2280, 1e-05
    %v2299 = vadd.f32 %v2281, 1e-05
    %v2300 = vrsqrt.pop %v2298
    %v2301 = vrsqrt.pop %v2299
    %v2302 = vmul.f32 %v2282, %v2300
    %v2303 = vmul.f32 %v2283, %v2300
    %v2304 = vmul.f32 %v2284, %v2300
    %v2305 = vmul.f32 %v2285, %v2300
    %v2306 = vmul.f32 %v2286, %v2300
    %v2307 = vmul.f32 %v2287, %v2300
    %v2308 = vmul.f32 %v2288, %v2300
    %v2309 = vmul.f32 %v2289, %v2300
    %v2310 = vmul.f32 %v2290, %v2301
    %v2311 = vmul.f32 %v2291, %v2301
    %v2312 = vmul.f32 %v2292, %v2301
    %v2313 = vmul.f32 %v2293, %v2301
    %v2314 = vmul.f32 %v2294, %v2301
    %v2315 = vmul.f32 %v2295, %v2301
    %v2316 = vmul.f32 %v2296, %v2301
    %v2317 = vmul.f32 %v2297, %v2301
    %vm2318 = vcmp.ge.f32.partialorder %v2302, 0.0
    %vm2319 = vcmp.ge.f32.partialorder %v2303, 0.0
    %vm2320 = vcmp.ge.f32.partialorder %v2304, 0.0
    %vm2321 = vcmp.ge.f32.partialorder %v2305, 0.0
    %vm2322 = vcmp.ge.f32.partialorder %v2306, 0.0
    %vm2323 = vcmp.ge.f32.partialorder %v2307, 0.0
    %vm2324 = vcmp.ge.f32.partialorder %v2308, 0.0
    %vm2325 = vcmp.ge.f32.partialorder %v2309, 0.0
    %vm2326 = vcmp.ge.f32.partialorder %v2310, 0.0
    %vm2327 = vcmp.ge.f32.partialorder %v2311, 0.0
    %vm2328 = vcmp.ge.f32.partialorder %v2312, 0.0
    %vm2329 = vcmp.ge.f32.partialorder %v2313, 0.0
    %vm2330 = vcmp.ge.f32.partialorder %v2314, 0.0
    %vm2331 = vcmp.ge.f32.partialorder %v2315, 0.0
    %vm2332 = vcmp.ge.f32.partialorder %v2316, 0.0
    %vm2333 = vcmp.ge.f32.partialorder %v2317, 0.0
    %v2334 = vstv %s2171
    %v2335 = vmul.f32 %v2334, %v2302
    %v2336 = vmul.f32 %v2334, %v2303
    %v2337 = vmul.f32 %v2334, %v2304
    %v2338 = vmul.f32 %v2334, %v2305
    %v2339 = vmul.f32 %v2334, %v2306
    %v2340 = vmul.f32 %v2334, %v2307
    %v2341 = vmul.f32 %v2334, %v2308
    %v2342 = vmul.f32 %v2334, %v2309
    %v2343 = vmul.f32 %v2334, %v2310
    %v2344 = vmul.f32 %v2334, %v2311
    %v2345 = vmul.f32 %v2334, %v2312
    %v2346 = vmul.f32 %v2334, %v2313
    %v2347 = vmul.f32 %v2334, %v2314
    %v2348 = vmul.f32 %v2334, %v2315
    %v2349 = vmul.f32 %v2334, %v2316
    %v2350 = vmul.f32 %v2334, %v2317
    %v2351 = vsel %vm2318, %v2302, %v2335
    %v2352 = vsel %vm2319, %v2303, %v2336
    %v2353 = vsel %vm2320, %v2304, %v2337
    %v2354 = vsel %vm2321, %v2305, %v2338
    %v2355 = vsel %vm2322, %v2306, %v2339
    %v2356 = vsel %vm2323, %v2307, %v2340
    %v2357 = vsel %vm2324, %v2308, %v2341
    %v2358 = vsel %vm2325, %v2309, %v2342
    %v2359 = vsel %vm2326, %v2310, %v2343
    %v2360 = vsel %vm2327, %v2311, %v2344
    %v2361 = vsel %vm2328, %v2312, %v2345
    %v2362 = vsel %vm2329, %v2313, %v2346
    %v2363 = vsel %vm2330, %v2314, %v2347
    %v2364 = vsel %vm2331, %v2315, %v2348
    %v2365 = vsel %vm2332, %v2316, %v2349
    %v2366 = vsel %vm2333, %v2317, %v2350
    %2367 = vst.msk [vmem:[#allocation4] sm:$0xff] %vm744, %v2351
    %2368 = vst.msk [vmem:[#allocation4 + $0x8] sm:$0xff] %vm744, %v2352
    %2369 = vst.msk [vmem:[#allocation4 + $0x10] sm:$0xff] %vm744, %v2353
    %2370 = vst.msk [vmem:[#allocation4 + $0x18] sm:$0xff] %vm744, %v2354
    %2371 = vst.msk [vmem:[#allocation4 + $0x20] sm:$0xff] %vm744, %v2355
    %2372 = vst.msk [vmem:[#allocation4 + $0x28] sm:$0xff] %vm744, %v2356
    %2373 = vst.msk [vmem:[#allocation4 + $0x30] sm:$0xff] %vm744, %v2357
    %2374 = vst.msk [vmem:[#allocation4 + $0x38] sm:$0xff] %vm744, %v2358
    %2375 = vst.msk [vmem:[#allocation4 + $0x40] sm:$0xff] %vm744, %v2359
    %2376 = vst.msk [vmem:[#allocation4 + $0x48] sm:$0xff] %vm744, %v2360
    %2377 = vst.msk [vmem:[#allocation4 + $0x50] sm:$0xff] %vm744, %v2361
    %2378 = vst.msk [vmem:[#allocation4 + $0x58] sm:$0xff] %vm744, %v2362
    %2379 = vst.msk [vmem:[#allocation4 + $0x60] sm:$0xff] %vm744, %v2363
    %2380 = vst.msk [vmem:[#allocation4 + $0x68] sm:$0xff] %vm744, %v2364
    %2381 = vst.msk [vmem:[#allocation4 + $0x70] sm:$0xff] %vm744, %v2365
    %2382 = vst.msk [vmem:[#allocation4 + $0x78] sm:$0xff] %vm744, %v2366
    // Predicated region
    $region22: #{tpu_custom_call.1} parent=1 // pred_check
      _
    $region23: #{tpu_custom_call.1} parent=1 // pred_check_branch
      %2384 = sbr.rel (0) target = $region25
    $region24: #{tpu_custom_call.1} parent=1 // pred_region
      %s2386 = ssub.s32 2048, 2048
      %2387 = vsyncadd [#allocation5], %s2386
      %s2388 = sshll.u32 [#allocation4], 4
      %s2389 = int_to_ptr.vmem [resolvable:$true] %s2388
      %2394 = dma.vmem_to_hbm [thread:$0]  %s2389, 2048, %s5, [#allocation5], 128, 128, 8
    $region25: #{tpu_custom_call.1} parent=1 // pred_fallthru
      _
    // Predicated region
    $region26: #{tpu_custom_call.1} parent=1 // pred_check
      _
    $region27: #{tpu_custom_call.1} parent=1 // pred_check_branch
      %2396 = sbr.rel (0) target = $region29
    $region28: #{tpu_custom_call.1} parent=1 // pred_region
      %2397 = dma.done [#allocation5], 2048
    $region29: #{tpu_custom_call.1} parent=1 // pred_fallthru
      _
    %2398 = vsyncpa [#allocation5], 1

</llo_original>
